<compile_context>
chip_gen: v6e
topology: v6e:2x2x1
jax: 0.10.0
libtpu: 0.0.40
codegen_flags: <defaults>
</compile_context>

<pallas_src>
import jax
import jax.numpy as jnp
from jax.experimental import pallas as pl
from jax.experimental.pallas import tpu as pltpu

EPS = 1e-5


def _res_linear_kernel(x_ref, w1_ref, b1_ref, g1_ref, be1_ref,
                       w2_ref, b2_ref, g2_ref, be2_ref, o_ref):
    B, Tt, H = x_ref.shape
    inv_n = 1.0 / float(B * H)          # BN normalizes over (B, H) per time-step

    # Hoist the per-t affine params (small VMEM vectors) before the reductions.
    g1 = g1_ref[...]                    # (1, Tt, 1)
    be1 = be1_ref[...]
    g2 = g2_ref[...]
    be2 = be2_ref[...]

    # ---- Linear 1: single (B*Tt, H) @ (H, H) matmul on the MXU ----
    x2d = x_ref[...].reshape(B * Tt, H)
    y = jnp.dot(x2d, w1_ref[...], preferred_element_type=jnp.float32) + b1_ref[...]
    y3 = y.reshape(B, Tt, H)

    # ---- BatchNorm1d(time) #1, training mode, one-pass stats per t over (B, H) ----
    s1 = jnp.sum(jnp.sum(y3, axis=0, keepdims=True), axis=2, keepdims=True)        # (1,Tt,1)
    ss1 = jnp.sum(jnp.sum(y3 * y3, axis=0, keepdims=True), axis=2, keepdims=True)  # (1,Tt,1)
    mean1 = s1 * inv_n
    var1 = jnp.maximum(ss1 * inv_n - mean1 * mean1, 0.0)   # clamp: one-pass var can dip < 0
    scale1 = jax.lax.rsqrt(var1 + EPS) * g1                # fold gamma into inv-std (EUP rsqrt)
    shift1 = be1 - mean1 * scale1
    y3 = jnp.maximum(y3 * scale1 + shift1, 0.0)            # BN affine + ReLU in one VPU pass

    # ---- Linear 2 ----
    z = jnp.dot(y3.reshape(B * Tt, H), w2_ref[...],
                preferred_element_type=jnp.float32) + b2_ref[...]
    z3 = z.reshape(B, Tt, H)

    # ---- BatchNorm1d(time) #2 + ReLU ----
    s2 = jnp.sum(jnp.sum(z3, axis=0, keepdims=True), axis=2, keepdims=True)
    ss2 = jnp.sum(jnp.sum(z3 * z3, axis=0, keepdims=True), axis=2, keepdims=True)
    mean2 = s2 * inv_n
    var2 = jnp.maximum(ss2 * inv_n - mean2 * mean2, 0.0)
    scale2 = jax.lax.rsqrt(var2 + EPS) * g2
    shift2 = be2 - mean2 * scale2
    o_ref[...] = jnp.maximum(z3 * scale2 + shift2, 0.0)


def _vmem_plan(B, T, H):
    """Generation-aware VMEM budgeting.

    Per grid step footprint:
      weights : W1 + W2 (budgeted as double-buffered to stay safe on fallback)
      params  : biases + per-t BN affine (tiny)
      acts    : (x block + out block) x 2 pipeline buffers = 4 x block bytes
    Returns (vmem_ceiling_bytes, per_buffer_activation_budget_bytes).
    """
    try:
        phys = int(pltpu.get_tpu_info().vmem_capacity_bytes)   # 128 MiB v5e/v6e, 64 MiB v7x
    except Exception:
        phys = 64 << 20                                        # conservative fallback (v7x)
    # Ceiling we are willing to request from the compiler: physical minus headroom
    # for compiler scratch / semaphores.
    ceiling = int(max(32 << 20, min(phys - (16 << 20), 100 << 20)))
    weight_bytes = 4 * H * H * 4            # W1 + W2, assume double-buffered (worst case)
    param_bytes = (4 * H + 8 * T) * 4
    act_budget = ceiling - weight_bytes - param_bytes - (2 << 20)
    per_buffer = max(act_budget // 4, B * 8 * H * 4)   # never below one 8-row slab
    return ceiling, per_buffer


def _pick_t_block(T, B, H, per_buffer_budget_bytes):
    """Largest multiple-of-8 divisor of T whose (B, t_block, H) f32 block fits the
    per-buffer VMEM budget.  Prefers a single block (max matmul M, min grid overhead);
    when splitting, prefers an even block count (balanced work for v7x's 2 TCs) as
    long as each block keeps >=256 matmul rows and >=0.5 MiB of activations."""
    bytes_per_t = B * H * 4
    cands = [c for c in range(8, T + 1, 8) if T % c == 0]
    if T not in cands:
        cands.append(T)   # fallback: full-extent T (legal even if not 8-aligned;
                          # the in-kernel reshape may then materialize a VMEM copy)
    fitting = [c for c in cands if c * bytes_per_t <= per_buffer_budget_bytes]
    if not fitting:
        return min(cands)
    best = max(fitting)
    n = T // best
    if n > 1 and n % 2 == 1:
        for c in sorted(fitting, reverse=True):
            if (T // c) % 2 == 0 and B * c >= 256 and c * bytes_per_t >= (512 << 10):
                best = c
                break
    return best


def res_linear_layer_pallas(x, w1, b1, g1, be1, w2, b2, g2, be2,
                            per_buffer_cap_bytes=None):
    """x: (B, T, H) float32. Weights already laid out as (H_in, H_out)."""
    B, T, H = x.shape
    vmem_ceiling, per_buffer = _vmem_plan(B, T, H)
    if per_buffer_cap_bytes is not None:           # test hook: force smaller tiles
        per_buffer = min(per_buffer, int(per_buffer_cap_bytes))
    t_block = _pick_t_block(T, B, H, per_buffer)
    n_blocks = T // t_block

    # Request only the VMEM we actually need (with margin), bounded by the
    # generation-aware ceiling; keeps big tiles usable on v5e's 16 MiB default
    # scoped limit without over-asking on v7x's 64 MiB part.
    block_bytes = B * t_block * H * 4
    need = 4 * H * H * 4 + 4 * block_bytes + (4 << 20)
    vmem_limit_bytes = int(min(vmem_ceiling, max(need, 32 << 20)))

    b1_2d = b1.reshape(1, H)
    b2_2d = b2.reshape(1, H)
    # Per-time-step BN affine params, shaped so a (1, t_block, 1) block broadcasts
    # directly against the (B, t_block, H) activation block inside the kernel.
    g1_3d = g1.reshape(1, T, 1)
    be1_3d = be1.reshape(1, T, 1)
    g2_3d = g2.reshape(1, T, 1)
    be2_3d = be2.reshape(1, T, 1)

    args = (x, w1, b1_2d, g1_3d, be1_3d, w2, b2_2d, g2_3d, be2_3d)

    def build(single_buffer_consts):
        # Constant-index blocks are fetched once -> single-buffer them to save VMEM
        # (halves the dominant 2*H^2*4 B weight footprint for large H).
        ck = (dict(pipeline_mode=pl.Buffered(1)) if single_buffer_consts else {})
        # BN per-t params only have a constant index when there is a single T block.
        pk = ck if n_blocks == 1 else {}

        act_spec = pl.BlockSpec((B, t_block, H), lambda i: (0, i, 0))
        par_spec = pl.BlockSpec((1, t_block, 1), lambda i: (0, i, 0), **pk)
        w_spec = pl.BlockSpec((H, H), lambda i: (0, 0), **ck)
        bias_spec = pl.BlockSpec((1, H), lambda i: (0, 0), **ck)

        return pl.pallas_call(
            _res_linear_kernel,
            out_shape=jax.ShapeDtypeStruct((B, T, H), jnp.float32),
            grid_spec=pltpu.PrefetchScalarGridSpec(
                num_scalar_prefetch=0,
                grid=(n_blocks,),
                in_specs=[
                    act_spec,    # x (B, t_block, H) slab, original layout (no transposes)
                    w_spec,      # W1
                    bias_spec,   # b1
                    par_spec,    # gamma1
                    par_spec,    # beta1
                    w_spec,      # W2
                    bias_spec,   # b2
                    par_spec,    # gamma2
                    par_spec,    # beta2
                ],
                out_specs=act_spec,
            ),
            compiler_params=pltpu.CompilerParams(
                dimension_semantics=("parallel",),
                vmem_limit_bytes=vmem_limit_bytes),
        )

    try:
        return build(True)(*args)
    except Exception:
        # Fallback if pl.Buffered(1) single-buffering is rejected by this jax build;
        # default double-buffering only costs an extra 2*H^2*4 bytes of VMEM.
        return build(False)(*args)


def _reference(x, w1, b1, g1, be1, w2, b2, g2, be2):
    # Plain-JAX reference matching PyTorch training-mode forward.
    y = x @ w1 + b1
    m = jnp.mean(y, axis=(0, 2), keepdims=True)
    v = jnp.mean((y - m) ** 2, axis=(0, 2), keepdims=True)
    y = (y - m) / jnp.sqrt(v + EPS)
    y = y * g1[None, :, None] + be1[None, :, None]
    y = jnp.maximum(y, 0.0)

    z = y @ w2 + b2
    m2 = jnp.mean(z, axis=(0, 2), keepdims=True)
    v2 = jnp.mean((z - m2) ** 2, axis=(0, 2), keepdims=True)
    z = (z - m2) / jnp.sqrt(v2 + EPS)
    z = z * g2[None, :, None] + be2[None, :, None]
    return jnp.maximum(z, 0.0)


if __name__ == "__main__":
    # Small shapes consistent with the module: linear_hidden=H, time=T, batch=B.
    B, T, H = 4, 16, 128

    key = jax.random.PRNGKey(0)
    kx, kw1, kb1, kw2, kb2, kg1, kbe1, kg2, kbe2 = jax.random.split(key, 9)

    x = jax.random.normal(kx, (B, T, H), dtype=jnp.float32)

    scale = 1.0 / jnp.sqrt(jnp.float32(H))
    # PyTorch Linear weight is (out, in); we store the transposed (in, out) layout.
    w1 = jax.random.uniform(kw1, (H, H), jnp.float32, -scale, scale)
    b1 = jax.random.uniform(kb1, (H,), jnp.float32, -scale, scale)
    w2 = jax.random.uniform(kw2, (H, H), jnp.float32, -scale, scale)
    b2 = jax.random.uniform(kb2, (H,), jnp.float32, -scale, scale)

    # BatchNorm affine params (defaults are ones/zeros; perturb to exercise broadcast).
    g1 = 1.0 + 0.1 * jax.random.normal(kg1, (T,), jnp.float32)
    be1 = 0.1 * jax.random.normal(kbe1, (T,), jnp.float32)
    g2 = 1.0 + 0.1 * jax.random.normal(kg2, (T,), jnp.float32)
    be2 = 0.1 * jax.random.normal(kbe2, (T,), jnp.float32)

    ref = _reference(x, w1, b1, g1, be1, w2, b2, g2, be2)

    # 1) Default policy: single (B, T, H) block -> matmul M = B*T = 64 rows.
    out = res_linear_layer_pallas(x, w1, b1, g1, be1, w2, b2, g2, be2)
    out = jax.block_until_ready(out)
    assert out.shape == (B, T, H)
    assert jnp.allclose(out, ref, atol=1e-4, rtol=1e-4), "mismatch vs reference (1 block)"

    # 2) Forced split (tiny per-buffer cap) to exercise the multi-block / parallel path.
    out2 = res_linear_layer_pallas(x, w1, b1, g1, be1, w2, b2, g2, be2,
                                   per_buffer_cap_bytes=B * 8 * H * 4)
    out2 = jax.block_until_ready(out2)
    assert jnp.allclose(out2, ref, atol=1e-4, rtol=1e-4), "mismatch vs reference (2 blocks)"

    print("KERNEL_OK")
</pallas_src>

<mosaic_0001>
module attributes {stable_mosaic.version = 11 : i64} {
  func.func @_res_linear_kernel(%arg0: i32, %arg1: memref<4x16x128xf32, #tpu.memory_space<vmem>>, %arg2: memref<128x128xf32, #tpu.memory_space<vmem>>, %arg3: memref<1x128xf32, #tpu.memory_space<vmem>>, %arg4: memref<1x16x1xf32, #tpu.memory_space<vmem>>, %arg5: memref<1x16x1xf32, #tpu.memory_space<vmem>>, %arg6: memref<128x128xf32, #tpu.memory_space<vmem>>, %arg7: memref<1x128xf32, #tpu.memory_space<vmem>>, %arg8: memref<1x16x1xf32, #tpu.memory_space<vmem>>, %arg9: memref<1x16x1xf32, #tpu.memory_space<vmem>>, %arg10: memref<4x16x128xf32, #tpu.memory_space<vmem>>) attributes {dimension_semantics = [#tpu.dimension_semantics<parallel>], iteration_bounds = array<i64: 1>, scalar_prefetch = 0 : i64, scratch_operands = 0 : i64, tpu.core_type = #tpu.core_type<tc>, window_params = [{transform_indices = @transform_0, window_bounds = array<i64: 4, 16, 128>}, {pipeline_mode = #tpu.pipeline_mode<synchronous>, transform_indices = @transform_1, window_bounds = array<i64: 128, 128>}, {pipeline_mode = #tpu.pipeline_mode<synchronous>, transform_indices = @transform_2, window_bounds = array<i64: 1, 128>}, {pipeline_mode = #tpu.pipeline_mode<synchronous>, transform_indices = @transform_3, window_bounds = array<i64: 1, 16, 1>}, {pipeline_mode = #tpu.pipeline_mode<synchronous>, transform_indices = @transform_4, window_bounds = array<i64: 1, 16, 1>}, {pipeline_mode = #tpu.pipeline_mode<synchronous>, transform_indices = @transform_5, window_bounds = array<i64: 128, 128>}, {pipeline_mode = #tpu.pipeline_mode<synchronous>, transform_indices = @transform_6, window_bounds = array<i64: 1, 128>}, {pipeline_mode = #tpu.pipeline_mode<synchronous>, transform_indices = @transform_7, window_bounds = array<i64: 1, 16, 1>}, {pipeline_mode = #tpu.pipeline_mode<synchronous>, transform_indices = @transform_8, window_bounds = array<i64: 1, 16, 1>}, {transform_indices = @transform_9, window_bounds = array<i64: 4, 16, 128>}]} {
    %c0 = arith.constant 0 : index
    %c0_0 = arith.constant 0 : index
    %c0_1 = arith.constant 0 : index
    %0 = vector.load %arg4[%c0, %c0_0, %c0_1] : memref<1x16x1xf32, #tpu.memory_space<vmem>>, vector<1x16x1xf32>
    %c0_2 = arith.constant 0 : index
    %c0_3 = arith.constant 0 : index
    %c0_4 = arith.constant 0 : index
    %1 = vector.load %arg5[%c0_2, %c0_3, %c0_4] : memref<1x16x1xf32, #tpu.memory_space<vmem>>, vector<1x16x1xf32>
    %c0_5 = arith.constant 0 : index
    %c0_6 = arith.constant 0 : index
    %c0_7 = arith.constant 0 : index
    %2 = vector.load %arg8[%c0_5, %c0_6, %c0_7] : memref<1x16x1xf32, #tpu.memory_space<vmem>>, vector<1x16x1xf32>
    %c0_8 = arith.constant 0 : index
    %c0_9 = arith.constant 0 : index
    %c0_10 = arith.constant 0 : index
    %3 = vector.load %arg9[%c0_8, %c0_9, %c0_10] : memref<1x16x1xf32, #tpu.memory_space<vmem>>, vector<1x16x1xf32>
    %c0_11 = arith.constant 0 : index
    %c0_12 = arith.constant 0 : index
    %c0_13 = arith.constant 0 : index
    %4 = vector.load %arg1[%c0_11, %c0_12, %c0_13] : memref<4x16x128xf32, #tpu.memory_space<vmem>>, vector<4x16x128xf32>
    %5 = vector.shape_cast %4 : vector<4x16x128xf32> to vector<64x128xf32>
    %c0_14 = arith.constant 0 : index
    %c0_15 = arith.constant 0 : index
    %6 = vector.load %arg2[%c0_14, %c0_15] : memref<128x128xf32, #tpu.memory_space<vmem>>, vector<128x128xf32>
    %cst = arith.constant dense<0.000000e+00> : vector<64x128xf32>
    %7 = tpu.matmul %5, %6, %cst {dimension_numbers = #tpu.dot_dimension_numbers<[1], [0], [0], [1], [0, 0, 1, 1], [], []>} : vector<64x128xf32>, vector<128x128xf32>, vector<64x128xf32> -> vector<64x128xf32>
    %c0_16 = arith.constant 0 : index
    %c0_17 = arith.constant 0 : index
    %8 = vector.load %arg3[%c0_16, %c0_17] : memref<1x128xf32, #tpu.memory_space<vmem>>, vector<1x128xf32>
    %9 = vector.broadcast %8 : vector<1x128xf32> to vector<64x128xf32>
    %10 = arith.addf %7, %9 : vector<64x128xf32>
    %11 = vector.shape_cast %10 : vector<64x128xf32> to vector<4x16x128xf32>
    %cst_18 = arith.constant dense<0.000000e+00> : vector<16x128xf32>
    %12 = vector.multi_reduction <add>, %11, %cst_18 [0] : vector<4x16x128xf32> to vector<16x128xf32>
    %13 = vector.shape_cast %12 : vector<16x128xf32> to vector<1x16x128xf32>
    %cst_19 = arith.constant dense<0.000000e+00> : vector<1x16xf32>
    %14 = vector.multi_reduction <add>, %13, %cst_19 [2] : vector<1x16x128xf32> to vector<1x16xf32>
    %15 = vector.shape_cast %14 : vector<1x16xf32> to vector<1x16x1xf32>
    %16 = arith.mulf %11, %11 : vector<4x16x128xf32>
    %cst_20 = arith.constant dense<0.000000e+00> : vector<16x128xf32>
    %17 = vector.multi_reduction <add>, %16, %cst_20 [0] : vector<4x16x128xf32> to vector<16x128xf32>
    %18 = vector.shape_cast %17 : vector<16x128xf32> to vector<1x16x128xf32>
    %cst_21 = arith.constant dense<0.000000e+00> : vector<1x16xf32>
    %19 = vector.multi_reduction <add>, %18, %cst_21 [2] : vector<1x16x128xf32> to vector<1x16xf32>
    %20 = vector.shape_cast %19 : vector<1x16xf32> to vector<1x16x1xf32>
    %cst_22 = arith.constant 0.001953125 : f32
    %21 = vector.broadcast %cst_22 : f32 to vector<1x16x1xf32>
    %22 = arith.mulf %15, %21 : vector<1x16x1xf32>
    %cst_23 = arith.constant 0.001953125 : f32
    %23 = vector.broadcast %cst_23 : f32 to vector<1x16x1xf32>
    %24 = arith.mulf %20, %23 : vector<1x16x1xf32>
    %25 = arith.mulf %22, %22 : vector<1x16x1xf32>
    %26 = arith.subf %24, %25 : vector<1x16x1xf32>
    %cst_24 = arith.constant 0.000000e+00 : f32
    %27 = vector.broadcast %cst_24 : f32 to vector<1x16x1xf32>
    %28 = arith.maximumf %26, %27 : vector<1x16x1xf32>
    %cst_25 = arith.constant 9.99999974E-6 : f32
    %29 = vector.broadcast %cst_25 : f32 to vector<1x16x1xf32>
    %30 = arith.addf %28, %29 : vector<1x16x1xf32>
    %31 = math.rsqrt %30 : vector<1x16x1xf32>
    %32 = arith.mulf %31, %0 : vector<1x16x1xf32>
    %33 = arith.mulf %22, %32 : vector<1x16x1xf32>
    %34 = arith.subf %1, %33 : vector<1x16x1xf32>
    %35 = vector.broadcast %32 : vector<1x16x1xf32> to vector<4x16x128xf32>
    %36 = arith.mulf %11, %35 : vector<4x16x128xf32>
    %37 = vector.broadcast %34 : vector<1x16x1xf32> to vector<4x16x128xf32>
    %38 = arith.addf %36, %37 : vector<4x16x128xf32>
    %cst_26 = arith.constant 0.000000e+00 : f32
    %39 = vector.broadcast %cst_26 : f32 to vector<4x16x128xf32>
    %40 = arith.maximumf %38, %39 : vector<4x16x128xf32>
    %41 = vector.shape_cast %40 : vector<4x16x128xf32> to vector<64x128xf32>
    %c0_27 = arith.constant 0 : index
    %c0_28 = arith.constant 0 : index
    %42 = vector.load %arg6[%c0_27, %c0_28] : memref<128x128xf32, #tpu.memory_space<vmem>>, vector<128x128xf32>
    %cst_29 = arith.constant dense<0.000000e+00> : vector<64x128xf32>
    %43 = tpu.matmul %41, %42, %cst_29 {dimension_numbers = #tpu.dot_dimension_numbers<[1], [0], [0], [1], [0, 0, 1, 1], [], []>} : vector<64x128xf32>, vector<128x128xf32>, vector<64x128xf32> -> vector<64x128xf32>
    %c0_30 = arith.constant 0 : index
    %c0_31 = arith.constant 0 : index
    %44 = vector.load %arg7[%c0_30, %c0_31] : memref<1x128xf32, #tpu.memory_space<vmem>>, vector<1x128xf32>
    %45 = vector.broadcast %44 : vector<1x128xf32> to vector<64x128xf32>
    %46 = arith.addf %43, %45 : vector<64x128xf32>
    %47 = vector.shape_cast %46 : vector<64x128xf32> to vector<4x16x128xf32>
    %cst_32 = arith.constant dense<0.000000e+00> : vector<16x128xf32>
    %48 = vector.multi_reduction <add>, %47, %cst_32 [0] : vector<4x16x128xf32> to vector<16x128xf32>
    %49 = vector.shape_cast %48 : vector<16x128xf32> to vector<1x16x128xf32>
    %cst_33 = arith.constant dense<0.000000e+00> : vector<1x16xf32>
    %50 = vector.multi_reduction <add>, %49, %cst_33 [2] : vector<1x16x128xf32> to vector<1x16xf32>
    %51 = vector.shape_cast %50 : vector<1x16xf32> to vector<1x16x1xf32>
    %52 = arith.mulf %47, %47 : vector<4x16x128xf32>
    %cst_34 = arith.constant dense<0.000000e+00> : vector<16x128xf32>
    %53 = vector.multi_reduction <add>, %52, %cst_34 [0] : vector<4x16x128xf32> to vector<16x128xf32>
    %54 = vector.shape_cast %53 : vector<16x128xf32> to vector<1x16x128xf32>
    %cst_35 = arith.constant dense<0.000000e+00> : vector<1x16xf32>
    %55 = vector.multi_reduction <add>, %54, %cst_35 [2] : vector<1x16x128xf32> to vector<1x16xf32>
    %56 = vector.shape_cast %55 : vector<1x16xf32> to vector<1x16x1xf32>
    %cst_36 = arith.constant 0.001953125 : f32
    %57 = vector.broadcast %cst_36 : f32 to vector<1x16x1xf32>
    %58 = arith.mulf %51, %57 : vector<1x16x1xf32>
    %cst_37 = arith.constant 0.001953125 : f32
    %59 = vector.broadcast %cst_37 : f32 to vector<1x16x1xf32>
    %60 = arith.mulf %56, %59 : vector<1x16x1xf32>
    %61 = arith.mulf %58, %58 : vector<1x16x1xf32>
    %62 = arith.subf %60, %61 : vector<1x16x1xf32>
    %cst_38 = arith.constant 0.000000e+00 : f32
    %63 = vector.broadcast %cst_38 : f32 to vector<1x16x1xf32>
    %64 = arith.maximumf %62, %63 : vector<1x16x1xf32>
    %cst_39 = arith.constant 9.99999974E-6 : f32
    %65 = vector.broadcast %cst_39 : f32 to vector<1x16x1xf32>
    %66 = arith.addf %64, %65 : vector<1x16x1xf32>
    %67 = math.rsqrt %66 : vector<1x16x1xf32>
    %68 = arith.mulf %67, %2 : vector<1x16x1xf32>
    %69 = arith.mulf %58, %68 : vector<1x16x1xf32>
    %70 = arith.subf %3, %69 : vector<1x16x1xf32>
    %71 = vector.broadcast %68 : vector<1x16x1xf32> to vector<4x16x128xf32>
    %72 = arith.mulf %47, %71 : vector<4x16x128xf32>
    %73 = vector.broadcast %70 : vector<1x16x1xf32> to vector<4x16x128xf32>
    %74 = arith.addf %72, %73 : vector<4x16x128xf32>
    %cst_40 = arith.constant 0.000000e+00 : f32
    %75 = vector.broadcast %cst_40 : f32 to vector<4x16x128xf32>
    %76 = arith.maximumf %74, %75 : vector<4x16x128xf32>
    %c0_41 = arith.constant 0 : index
    %c0_42 = arith.constant 0 : index
    %c0_43 = arith.constant 0 : index
    %77 = vector.load %arg10[%c0_41, %c0_42, %c0_43] : memref<4x16x128xf32, #tpu.memory_space<vmem>>, vector<4x16x128xf32>
    tpu.vector_store %arg10[%c0_41, %c0_42, %c0_43], %76 {strides = array<i32>} : memref<4x16x128xf32, #tpu.memory_space<vmem>>, vector<4x16x128xf32>,
    return
  }
  func.func @transform_0(%arg0: i32) -> (i32, i32, i32) {
    %c0_i32 = arith.constant 0 : i32
    %c0_i32_0 = arith.constant 0 : i32
    %c0_i32_1 = arith.constant 0 : i32
    return %c0_i32, %arg0, %c0_i32_0 : i32, i32, i32
  }
  func.func @transform_1(%arg0: i32) -> (i32, i32) {
    %c0_i32 = arith.constant 0 : i32
    %c0_i32_0 = arith.constant 0 : i32
    %c0_i32_1 = arith.constant 0 : i32
    return %c0_i32, %c0_i32_0 : i32, i32
  }
  func.func @transform_2(%arg0: i32) -> (i32, i32) {
    %c0_i32 = arith.constant 0 : i32
    %c0_i32_0 = arith.constant 0 : i32
    %c0_i32_1 = arith.constant 0 : i32
    return %c0_i32, %c0_i32_0 : i32, i32
  }
  func.func @transform_3(%arg0: i32) -> (i32, i32, i32) {
    %c0_i32 = arith.constant 0 : i32
    %c0_i32_0 = arith.constant 0 : i32
    %c0_i32_1 = arith.constant 0 : i32
    return %c0_i32, %arg0, %c0_i32_0 : i32, i32, i32
  }
  func.func @transform_4(%arg0: i32) -> (i32, i32, i32) {
    %c0_i32 = arith.constant 0 : i32
    %c0_i32_0 = arith.constant 0 : i32
    %c0_i32_1 = arith.constant 0 : i32
    return %c0_i32, %arg0, %c0_i32_0 : i32, i32, i32
  }
  func.func @transform_5(%arg0: i32) -> (i32, i32) {
    %c0_i32 = arith.constant 0 : i32
    %c0_i32_0 = arith.constant 0 : i32
    %c0_i32_1 = arith.constant 0 : i32
    return %c0_i32, %c0_i32_0 : i32, i32
  }
  func.func @transform_6(%arg0: i32) -> (i32, i32) {
    %c0_i32 = arith.constant 0 : i32
    %c0_i32_0 = arith.constant 0 : i32
    %c0_i32_1 = arith.constant 0 : i32
    return %c0_i32, %c0_i32_0 : i32, i32
  }
  func.func @transform_7(%arg0: i32) -> (i32, i32, i32) {
    %c0_i32 = arith.constant 0 : i32
    %c0_i32_0 = arith.constant 0 : i32
    %c0_i32_1 = arith.constant 0 : i32
    return %c0_i32, %arg0, %c0_i32_0 : i32, i32, i32
  }
  func.func @transform_8(%arg0: i32) -> (i32, i32, i32) {
    %c0_i32 = arith.constant 0 : i32
    %c0_i32_0 = arith.constant 0 : i32
    %c0_i32_1 = arith.constant 0 : i32
    return %c0_i32, %arg0, %c0_i32_0 : i32, i32, i32
  }
  func.func @transform_9(%arg0: i32) -> (i32, i32, i32) {
    %c0_i32 = arith.constant 0 : i32
    %c0_i32_0 = arith.constant 0 : i32
    %c0_i32_1 = arith.constant 0 : i32
    return %c0_i32, %arg0, %c0_i32_0 : i32, i32, i32
  }
}

module attributes {stable_mosaic.version = 11 : i64} {
  func.func @_res_linear_kernel(%arg0: i32, %arg1: memref<4x16x128xf32, #tpu.memory_space<vmem>>, %arg2: memref<128x128xf32, #tpu.memory_space<vmem>>, %arg3: memref<1x128xf32, #tpu.memory_space<vmem>>, %arg4: memref<1x16x1xf32, #tpu.memory_space<vmem>>, %arg5: memref<1x16x1xf32, #tpu.memory_space<vmem>>, %arg6: memref<128x128xf32, #tpu.memory_space<vmem>>, %arg7: memref<1x128xf32, #tpu.memory_space<vmem>>, %arg8: memref<1x16x1xf32, #tpu.memory_space<vmem>>, %arg9: memref<1x16x1xf32, #tpu.memory_space<vmem>>, %arg10: memref<4x16x128xf32, #tpu.memory_space<vmem>>) attributes {dimension_semantics = [#tpu.dimension_semantics<parallel>], iteration_bounds = array<i64: 1>, scalar_prefetch = 0 : i64, scratch_operands = 0 : i64, tpu.core_type = #tpu.core_type<tc>, window_params = [{transform_indices = @transform_0, window_bounds = array<i64: 4, 16, 128>}, {pipeline_mode = #tpu.pipeline_mode<synchronous>, transform_indices = @transform_1, window_bounds = array<i64: 128, 128>}, {pipeline_mode = #tpu.pipeline_mode<synchronous>, transform_indices = @transform_2, window_bounds = array<i64: 1, 128>}, {transform_indices = @transform_3, window_bounds = array<i64: 1, 16, 1>}, {transform_indices = @transform_4, window_bounds = array<i64: 1, 16, 1>}, {pipeline_mode = #tpu.pipeline_mode<synchronous>, transform_indices = @transform_5, window_bounds = array<i64: 128, 128>}, {pipeline_mode = #tpu.pipeline_mode<synchronous>, transform_indices = @transform_6, window_bounds = array<i64: 1, 128>}, {transform_indices = @transform_7, window_bounds = array<i64: 1, 16, 1>}, {transform_indices = @transform_8, window_bounds = array<i64: 1, 16, 1>}, {transform_indices = @transform_9, window_bounds = array<i64: 4, 16, 128>}]} {
    %c0 = arith.constant 0 : index
    %c0_0 = arith.constant 0 : index
    %c0_1 = arith.constant 0 : index
    %0 = vector.load %arg4[%c0, %c0_0, %c0_1] : memref<1x16x1xf32, #tpu.memory_space<vmem>>, vector<1x16x1xf32>
    %c0_2 = arith.constant 0 : index
    %c0_3 = arith.constant 0 : index
    %c0_4 = arith.constant 0 : index
    %1 = vector.load %arg5[%c0_2, %c0_3, %c0_4] : memref<1x16x1xf32, #tpu.memory_space<vmem>>, vector<1x16x1xf32>
    %c0_5 = arith.constant 0 : index
    %c0_6 = arith.constant 0 : index
    %c0_7 = arith.constant 0 : index
    %2 = vector.load %arg8[%c0_5, %c0_6, %c0_7] : memref<1x16x1xf32, #tpu.memory_space<vmem>>, vector<1x16x1xf32>
    %c0_8 = arith.constant 0 : index
    %c0_9 = arith.constant 0 : index
    %c0_10 = arith.constant 0 : index
    %3 = vector.load %arg9[%c0_8, %c0_9, %c0_10] : memref<1x16x1xf32, #tpu.memory_space<vmem>>, vector<1x16x1xf32>
    %c0_11 = arith.constant 0 : index
    %c0_12 = arith.constant 0 : index
    %c0_13 = arith.constant 0 : index
    %4 = vector.load %arg1[%c0_11, %c0_12, %c0_13] : memref<4x16x128xf32, #tpu.memory_space<vmem>>, vector<4x16x128xf32>
    %5 = vector.shape_cast %4 : vector<4x16x128xf32> to vector<64x128xf32>
    %c0_14 = arith.constant 0 : index
    %c0_15 = arith.constant 0 : index
    %6 = vector.load %arg2[%c0_14, %c0_15] : memref<128x128xf32, #tpu.memory_space<vmem>>, vector<128x128xf32>
    %cst = arith.constant dense<0.000000e+00> : vector<64x128xf32>
    %7 = tpu.matmul %5, %6, %cst {dimension_numbers = #tpu.dot_dimension_numbers<[1], [0], [0], [1], [0, 0, 1, 1], [], []>} : vector<64x128xf32>, vector<128x128xf32>, vector<64x128xf32> -> vector<64x128xf32>
    %c0_16 = arith.constant 0 : index
    %c0_17 = arith.constant 0 : index
    %8 = vector.load %arg3[%c0_16, %c0_17] : memref<1x128xf32, #tpu.memory_space<vmem>>, vector<1x128xf32>
    %9 = vector.broadcast %8 : vector<1x128xf32> to vector<64x128xf32>
    %10 = arith.addf %7, %9 : vector<64x128xf32>
    %11 = vector.shape_cast %10 : vector<64x128xf32> to vector<4x16x128xf32>
    %cst_18 = arith.constant dense<0.000000e+00> : vector<16x128xf32>
    %12 = vector.multi_reduction <add>, %11, %cst_18 [0] : vector<4x16x128xf32> to vector<16x128xf32>
    %13 = vector.shape_cast %12 : vector<16x128xf32> to vector<1x16x128xf32>
    %cst_19 = arith.constant dense<0.000000e+00> : vector<1x16xf32>
    %14 = vector.multi_reduction <add>, %13, %cst_19 [2] : vector<1x16x128xf32> to vector<1x16xf32>
    %15 = vector.shape_cast %14 : vector<1x16xf32> to vector<1x16x1xf32>
    %16 = arith.mulf %11, %11 : vector<4x16x128xf32>
    %cst_20 = arith.constant dense<0.000000e+00> : vector<16x128xf32>
    %17 = vector.multi_reduction <add>, %16, %cst_20 [0] : vector<4x16x128xf32> to vector<16x128xf32>
    %18 = vector.shape_cast %17 : vector<16x128xf32> to vector<1x16x128xf32>
    %cst_21 = arith.constant dense<0.000000e+00> : vector<1x16xf32>
    %19 = vector.multi_reduction <add>, %18, %cst_21 [2] : vector<1x16x128xf32> to vector<1x16xf32>
    %20 = vector.shape_cast %19 : vector<1x16xf32> to vector<1x16x1xf32>
    %cst_22 = arith.constant 0.001953125 : f32
    %21 = vector.broadcast %cst_22 : f32 to vector<1x16x1xf32>
    %22 = arith.mulf %15, %21 : vector<1x16x1xf32>
    %cst_23 = arith.constant 0.001953125 : f32
    %23 = vector.broadcast %cst_23 : f32 to vector<1x16x1xf32>
    %24 = arith.mulf %20, %23 : vector<1x16x1xf32>
    %25 = arith.mulf %22, %22 : vector<1x16x1xf32>
    %26 = arith.subf %24, %25 : vector<1x16x1xf32>
    %cst_24 = arith.constant 0.000000e+00 : f32
    %27 = vector.broadcast %cst_24 : f32 to vector<1x16x1xf32>
    %28 = arith.maximumf %26, %27 : vector<1x16x1xf32>
    %cst_25 = arith.constant 9.99999974E-6 : f32
    %29 = vector.broadcast %cst_25 : f32 to vector<1x16x1xf32>
    %30 = arith.addf %28, %29 : vector<1x16x1xf32>
    %31 = math.rsqrt %30 : vector<1x16x1xf32>
    %32 = arith.mulf %31, %0 : vector<1x16x1xf32>
    %33 = arith.mulf %22, %32 : vector<1x16x1xf32>
    %34 = arith.subf %1, %33 : vector<1x16x1xf32>
    %35 = vector.broadcast %32 : vector<1x16x1xf32> to vector<4x16x128xf32>
    %36 = arith.mulf %11, %35 : vector<4x16x128xf32>
    %37 = vector.broadcast %34 : vector<1x16x1xf32> to vector<4x16x128xf32>
    %38 = arith.addf %36, %37 : vector<4x16x128xf32>
    %cst_26 = arith.constant 0.000000e+00 : f32
    %39 = vector.broadcast %cst_26 : f32 to vector<4x16x128xf32>
    %40 = arith.maximumf %38, %39 : vector<4x16x128xf32>
    %41 = vector.shape_cast %40 : vector<4x16x128xf32> to vector<64x128xf32>
    %c0_27 = arith.constant 0 : index
    %c0_28 = arith.constant 0 : index
    %42 = vector.load %arg6[%c0_27, %c0_28] : memref<128x128xf32, #tpu.memory_space<vmem>>, vector<128x128xf32>
    %cst_29 = arith.constant dense<0.000000e+00> : vector<64x128xf32>
    %43 = tpu.matmul %41, %42, %cst_29 {dimension_numbers = #tpu.dot_dimension_numbers<[1], [0], [0], [1], [0, 0, 1, 1], [], []>} : vector<64x128xf32>, vector<128x128xf32>, vector<64x128xf32> -> vector<64x128xf32>
    %c0_30 = arith.constant 0 : index
    %c0_31 = arith.constant 0 : index
    %44 = vector.load %arg7[%c0_30, %c0_31] : memref<1x128xf32, #tpu.memory_space<vmem>>, vector<1x128xf32>
    %45 = vector.broadcast %44 : vector<1x128xf32> to vector<64x128xf32>
    %46 = arith.addf %43, %45 : vector<64x128xf32>
    %47 = vector.shape_cast %46 : vector<64x128xf32> to vector<4x16x128xf32>
    %cst_32 = arith.constant dense<0.000000e+00> : vector<16x128xf32>
    %48 = vector.multi_reduction <add>, %47, %cst_32 [0] : vector<4x16x128xf32> to vector<16x128xf32>
    %49 = vector.shape_cast %48 : vector<16x128xf32> to vector<1x16x128xf32>
    %cst_33 = arith.constant dense<0.000000e+00> : vector<1x16xf32>
    %50 = vector.multi_reduction <add>, %49, %cst_33 [2] : vector<1x16x128xf32> to vector<1x16xf32>
    %51 = vector.shape_cast %50 : vector<1x16xf32> to vector<1x16x1xf32>
    %52 = arith.mulf %47, %47 : vector<4x16x128xf32>
    %cst_34 = arith.constant dense<0.000000e+00> : vector<16x128xf32>
    %53 = vector.multi_reduction <add>, %52, %cst_34 [0] : vector<4x16x128xf32> to vector<16x128xf32>
    %54 = vector.shape_cast %53 : vector<16x128xf32> to vector<1x16x128xf32>
    %cst_35 = arith.constant dense<0.000000e+00> : vector<1x16xf32>
    %55 = vector.multi_reduction <add>, %54, %cst_35 [2] : vector<1x16x128xf32> to vector<1x16xf32>
    %56 = vector.shape_cast %55 : vector<1x16xf32> to vector<1x16x1xf32>
    %cst_36 = arith.constant 0.001953125 : f32
    %57 = vector.broadcast %cst_36 : f32 to vector<1x16x1xf32>
    %58 = arith.mulf %51, %57 : vector<1x16x1xf32>
    %cst_37 = arith.constant 0.001953125 : f32
    %59 = vector.broadcast %cst_37 : f32 to vector<1x16x1xf32>
    %60 = arith.mulf %56, %59 : vector<1x16x1xf32>
    %61 = arith.mulf %58, %58 : vector<1x16x1xf32>
    %62 = arith.subf %60, %61 : vector<1x16x1xf32>
    %cst_38 = arith.constant 0.000000e+00 : f32
    %63 = vector.broadcast %cst_38 : f32 to vector<1x16x1xf32>
    %64 = arith.maximumf %62, %63 : vector<1x16x1xf32>
    %cst_39 = arith.constant 9.99999974E-6 : f32
    %65 = vector.broadcast %cst_39 : f32 to vector<1x16x1xf32>
    %66 = arith.addf %64, %65 : vector<1x16x1xf32>
    %67 = math.rsqrt %66 : vector<1x16x1xf32>
    %68 = arith.mulf %67, %2 : vector<1x16x1xf32>
    %69 = arith.mulf %58, %68 : vector<1x16x1xf32>
    %70 = arith.subf %3, %69 : vector<1x16x1xf32>
    %71 = vector.broadcast %68 : vector<1x16x1xf32> to vector<4x16x128xf32>
    %72 = arith.mulf %47, %71 : vector<4x16x128xf32>
    %73 = vector.broadcast %70 : vector<1x16x1xf32> to vector<4x16x128xf32>
    %74 = arith.addf %72, %73 : vector<4x16x128xf32>
    %cst_40 = arith.constant 0.000000e+00 : f32
    %75 = vector.broadcast %cst_40 : f32 to vector<4x16x128xf32>
    %76 = arith.maximumf %74, %75 : vector<4x16x128xf32>
    %c0_41 = arith.constant 0 : index
    %c0_42 = arith.constant 0 : index
    %c0_43 = arith.constant 0 : index
    %77 = vector.load %arg10[%c0_41, %c0_42, %c0_43] : memref<4x16x128xf32, #tpu.memory_space<vmem>>, vector<4x16x128xf32>
    tpu.vector_store %arg10[%c0_41, %c0_42, %c0_43], %76 {strides = array<i32>} : memref<4x16x128xf32, #tpu.memory_space<vmem>>, vector<4x16x128xf32>,
    return
  }
  func.func @transform_0(%arg0: i32) -> (i32, i32, i32) {
    %c0_i32 = arith.constant 0 : i32
    %c0_i32_0 = arith.constant 0 : i32
    %c0_i32_1 = arith.constant 0 : i32
    return %c0_i32, %arg0, %c0_i32_0 : i32, i32, i32
  }
  func.func @transform_1(%arg0: i32) -> (i32, i32) {
    %c0_i32 = arith.constant 0 : i32
    %c0_i32_0 = arith.constant 0 : i32
    %c0_i32_1 = arith.constant 0 : i32
    return %c0_i32, %c0_i32_0 : i32, i32
  }
  func.func @transform_2(%arg0: i32) -> (i32, i32) {
    %c0_i32 = arith.constant 0 : i32
    %c0_i32_0 = arith.constant 0 : i32
    %c0_i32_1 = arith.constant 0 : i32
    return %c0_i32, %c0_i32_0 : i32, i32
  }
  func.func @transform_3(%arg0: i32) -> (i32, i32, i32) {
    %c0_i32 = arith.constant 0 : i32
    %c0_i32_0 = arith.constant 0 : i32
    %c0_i32_1 = arith.constant 0 : i32
    return %c0_i32, %arg0, %c0_i32_0 : i32, i32, i32
  }
  func.func @transform_4(%arg0: i32) -> (i32, i32, i32) {
    %c0_i32 = arith.constant 0 : i32
    %c0_i32_0 = arith.constant 0 : i32
    %c0_i32_1 = arith.constant 0 : i32
    return %c0_i32, %arg0, %c0_i32_0 : i32, i32, i32
  }
  func.func @transform_5(%arg0: i32) -> (i32, i32) {
    %c0_i32 = arith.constant 0 : i32
    %c0_i32_0 = arith.constant 0 : i32
    %c0_i32_1 = arith.constant 0 : i32
    return %c0_i32, %c0_i32_0 : i32, i32
  }
  func.func @transform_6(%arg0: i32) -> (i32, i32) {
    %c0_i32 = arith.constant 0 : i32
    %c0_i32_0 = arith.constant 0 : i32
    %c0_i32_1 = arith.constant 0 : i32
    return %c0_i32, %c0_i32_0 : i32, i32
  }
  func.func @transform_7(%arg0: i32) -> (i32, i32, i32) {
    %c0_i32 = arith.constant 0 : i32
    %c0_i32_0 = arith.constant 0 : i32
    %c0_i32_1 = arith.constant 0 : i32
    return %c0_i32, %arg0, %c0_i32_0 : i32, i32, i32
  }
  func.func @transform_8(%arg0: i32) -> (i32, i32, i32) {
    %c0_i32 = arith.constant 0 : i32
    %c0_i32_0 = arith.constant 0 : i32
    %c0_i32_1 = arith.constant 0 : i32
    return %c0_i32, %arg0, %c0_i32_0 : i32, i32, i32
  }
  func.func @transform_9(%arg0: i32) -> (i32, i32, i32) {
    %c0_i32 = arith.constant 0 : i32
    %c0_i32_0 = arith.constant 0 : i32
    %c0_i32_1 = arith.constant 0 : i32
    return %c0_i32, %arg0, %c0_i32_0 : i32, i32, i32
  }
}

</mosaic_0001>

<llo_original>
// kernel: tpu_custom_call.1
$region0: #{tpu_custom_call.1}
  #allocation0 [shape = 'u32[]', space=smem, size = 0x4, offset = 0x4, fixed_abs, tag = 'smem constant byte address 0x4 - core index']
  #allocation1 [shape = 'u32[144,128]{1,0:T(1,128)}', space=vmem, size = 0x12000, scoped, tag = 'internal scratch']
  %s0 = inlined_call_operand.vmem [shape: f32[4,16,128], index: 0, kind: input, shape index: {}]
  %s1 = inlined_call_operand.hbm [shape: f32[128,128], index: 1, kind: input, shape index: {}]
  %s2 = inlined_call_operand.vmem [shape: f32[1,128], index: 2, kind: input, shape index: {}]
  %s3 = inlined_call_operand.vmem [shape: f32[1,16,1], index: 3, kind: input, shape index: {}]
  %s4 = inlined_call_operand.vmem [shape: f32[1,16,1], index: 4, kind: input, shape index: {}]
  %s5 = inlined_call_operand.hbm [shape: f32[128,128], index: 5, kind: input, shape index: {}]
  %s6 = inlined_call_operand.vmem [shape: f32[1,128], index: 6, kind: input, shape index: {}]
  %s7 = inlined_call_operand.vmem [shape: f32[1,16,1], index: 7, kind: input, shape index: {}]
  %s8 = inlined_call_operand.vmem [shape: f32[1,16,1], index: 8, kind: input, shape index: {}]
  %s9 = inlined_call_operand.hbm [shape: f32[4,16,128], index: 9, kind: output, shape index: {}]
  %s10 = sld [smem:[#allocation0]]
  $region54: #{tpu_custom_call.1} parent=0
    _
  %s12 = ssub.s32 1, %s10
  %s13 = scalar_select 0, %s12, %s10
  $region1: #{tpu_custom_call.1} parent=0
    #allocation2 [shape = 'u8[65536]{0}', space=vmem, size = 0x10000, scoped, tag = 'input window, operand 1, single buffered']
    #allocation3 [shape = 's32[1]{0}', space=sflag, size = 0x4, scoped, tag = 'scoped memory for tpu_custom_call.1']
    #allocation4 [shape = 's32[1]{0}', space=sflag, size = 0x4, scoped, tag = 'scoped memory for tpu_custom_call.1']
    #allocation5 [shape = 'u8[65536]{0}', space=vmem, size = 0x10000, scoped, tag = 'input window, operand 5, single buffered']
    #allocation6 [shape = 's32[1]{0}', space=sflag, size = 0x4, scoped, tag = 'scoped memory for tpu_custom_call.1']
    #allocation7 [shape = 'u8[32768]{0}', space=vmem, size = 0x8000, scoped, tag = 'output window, operand 0, single buffered']
    %14 = vsyncpa [#allocation3], 0
    %15 = vsyncpa [#allocation6], 0
    %16 = vsyncpa [#allocation4], 0
    // Predicated region
    $region2: #{tpu_custom_call.1} parent=1 // pred_check
      _
    $region3: #{tpu_custom_call.1} parent=1 // pred_check_branch
      %18 = sbr.rel (0) target = $region5
    $region4: #{tpu_custom_call.1} parent=1 // pred_region
      _
    $region5: #{tpu_custom_call.1} parent=1 // pred_fallthru
      _
    // Predicated region
    $region6: #{tpu_custom_call.1} parent=1 // pred_check
      _
    $region7: #{tpu_custom_call.1} parent=1 // pred_check_branch
      %20 = sbr.rel (0) target = $region9
    $region8: #{tpu_custom_call.1} parent=1 // pred_region
      %s22 = ssub.s32 2048, 2048
      %23 = vsyncadd [#allocation3], %s22
      %s24 = sshll.u32 [#allocation2], 4
      %s25 = int_to_ptr.vmem [resolvable:$true] %s24
      %30 = dma.hbm_to_vmem [thread:$0]  %s1, 2048, %s25, [#allocation3], 128, 128, 8
    $region9: #{tpu_custom_call.1} parent=1 // pred_fallthru
      _
    // Predicated region
    $region10: #{tpu_custom_call.1} parent=1 // pred_check
      _
    $region11: #{tpu_custom_call.1} parent=1 // pred_check_branch
      %32 = sbr.rel (0) target = $region13
    $region12: #{tpu_custom_call.1} parent=1 // pred_region
      _
    $region13: #{tpu_custom_call.1} parent=1 // pred_fallthru
      _
    // Predicated region
    $region14: #{tpu_custom_call.1} parent=1 // pred_check
      _
    $region15: #{tpu_custom_call.1} parent=1 // pred_check_branch
      %34 = sbr.rel (0) target = $region17
    $region16: #{tpu_custom_call.1} parent=1 // pred_region
      _
    $region17: #{tpu_custom_call.1} parent=1 // pred_fallthru
      _
    // Predicated region
    $region18: #{tpu_custom_call.1} parent=1 // pred_check
      _
    $region19: #{tpu_custom_call.1} parent=1 // pred_check_branch
      %36 = sbr.rel (0) target = $region21
    $region20: #{tpu_custom_call.1} parent=1 // pred_region
      _
    $region21: #{tpu_custom_call.1} parent=1 // pred_fallthru
      _
    // Predicated region
    $region22: #{tpu_custom_call.1} parent=1 // pred_check
      _
    $region23: #{tpu_custom_call.1} parent=1 // pred_check_branch
      %38 = sbr.rel (0) target = $region25
    $region24: #{tpu_custom_call.1} parent=1 // pred_region
      %s40 = ssub.s32 2048, 2048
      %41 = vsyncadd [#allocation6], %s40
      %s42 = sshll.u32 [#allocation5], 4
      %s43 = int_to_ptr.vmem [resolvable:$true] %s42
      %48 = dma.hbm_to_vmem [thread:$0]  %s5, 2048, %s43, [#allocation6], 128, 128, 8
    $region25: #{tpu_custom_call.1} parent=1 // pred_fallthru
      _
    // Predicated region
    $region26: #{tpu_custom_call.1} parent=1 // pred_check
      _
    $region27: #{tpu_custom_call.1} parent=1 // pred_check_branch
      %50 = sbr.rel (0) target = $region29
    $region28: #{tpu_custom_call.1} parent=1 // pred_region
      _
    $region29: #{tpu_custom_call.1} parent=1 // pred_fallthru
      _
    // Predicated region
    $region30: #{tpu_custom_call.1} parent=1 // pred_check
      _
    $region31: #{tpu_custom_call.1} parent=1 // pred_check_branch
      %52 = sbr.rel (0) target = $region33
    $region32: #{tpu_custom_call.1} parent=1 // pred_region
      _
    $region33: #{tpu_custom_call.1} parent=1 // pred_fallthru
      _
    // Predicated region
    $region34: #{tpu_custom_call.1} parent=1 // pred_check
      _
    $region35: #{tpu_custom_call.1} parent=1 // pred_check_branch
      %54 = sbr.rel (0) target = $region37
    $region36: #{tpu_custom_call.1} parent=1 // pred_region
      _
    $region37: #{tpu_custom_call.1} parent=1 // pred_fallthru
      _
    // Predicated region
    $region38: #{tpu_custom_call.1} parent=1 // pred_check
      _
    $region39: #{tpu_custom_call.1} parent=1 // pred_check_branch
      %56 = sbr.rel (0) target = $region41
    $region40: #{tpu_custom_call.1} parent=1 // pred_region
      %57 = dma.done [#allocation3], 2048
    $region41: #{tpu_custom_call.1} parent=1 // pred_fallthru
      _
    // Predicated region
    $region42: #{tpu_custom_call.1} parent=1 // pred_check
      _
    $region43: #{tpu_custom_call.1} parent=1 // pred_check_branch
      %59 = sbr.rel (0) target = $region45
    $region44: #{tpu_custom_call.1} parent=1 // pred_region
      %60 = dma.done [#allocation6], 2048
    $region45: #{tpu_custom_call.1} parent=1 // pred_fallthru
      _
    %v61 = vld [vmem:[%s3] sm:$0xff]
    %v62 = vld [vmem:[%s3 + $0x8] sm:$0xff]
    %v63 = vld [vmem:[%s4] sm:$0xff]
    %v64 = vld [vmem:[%s4 + $0x8] sm:$0xff]
    %v65 = vld [vmem:[%s7] sm:$0xff]
    %v66 = vld [vmem:[%s7 + $0x8] sm:$0xff]
    %v67 = vld [vmem:[%s8] sm:$0xff]
    %v68 = vld [vmem:[%s8 + $0x8] sm:$0xff]
    %v69 = vld [vmem:[%s0] sm:$0xff]
    %v70 = vld [vmem:[%s0 + $0x8] sm:$0xff]
    %v71 = vld [vmem:[%s0 + $0x10] sm:$0xff]
    %v72 = vld [vmem:[%s0 + $0x18] sm:$0xff]
    %v73 = vld [vmem:[%s0 + $0x20] sm:$0xff]
    %v74 = vld [vmem:[%s0 + $0x28] sm:$0xff]
    %v75 = vld [vmem:[%s0 + $0x30] sm:$0xff]
    %v76 = vld [vmem:[%s0 + $0x38] sm:$0xff]
    %v77 = vld [vmem:[#allocation2] sm:$0xff]
    %v78 = vld [vmem:[#allocation2 + $0x8] sm:$0xff]
    %v79 = vld [vmem:[#allocation2 + $0x10] sm:$0xff]
    %v80 = vld [vmem:[#allocation2 + $0x18] sm:$0xff]
    %v81 = vld [vmem:[#allocation2 + $0x20] sm:$0xff]
    %v82 = vld [vmem:[#allocation2 + $0x28] sm:$0xff]
    %v83 = vld [vmem:[#allocation2 + $0x30] sm:$0xff]
    %v84 = vld [vmem:[#allocation2 + $0x38] sm:$0xff]
    %v85 = vld [vmem:[#allocation2 + $0x40] sm:$0xff]
    %v86 = vld [vmem:[#allocation2 + $0x48] sm:$0xff]
    %v87 = vld [vmem:[#allocation2 + $0x50] sm:$0xff]
    %v88 = vld [vmem:[#allocation2 + $0x58] sm:$0xff]
    %v89 = vld [vmem:[#allocation2 + $0x60] sm:$0xff]
    %v90 = vld [vmem:[#allocation2 + $0x68] sm:$0xff]
    %v91 = vld [vmem:[#allocation2 + $0x70] sm:$0xff]
    %v92 = vld [vmem:[#allocation2 + $0x78] sm:$0xff]
    %v93 = vld [vmem:[%s2] sm:$0x1]
    %v95 = vlaneseq
    %v96 = vshrl.u32 %v95, 7
    %v97 = vsub.s32 0, %v96
    %v98 = vrot.slane %v93, %v97
    %100 = vmatprep.subr.mxu0 0.0
    %101 = vmatpush1.msra.mxu0 %v92
    %102 = vmatprep.subr.mxu0 0.0
    %103 = vmatpush1.msra.mxu0 %v91
    %104 = vmatprep.subr.mxu0 0.0
    %105 = vmatpush1.msra.mxu0 %v90
    %106 = vmatprep.subr.mxu0 0.0
    %107 = vmatpush1.msra.mxu0 %v89
    %108 = vmatprep.subr.mxu0 0.0
    %109 = vmatpush1.msra.mxu0 %v88
    %110 = vmatprep.subr.mxu0 0.0
    %111 = vmatpush1.msra.mxu0 %v87
    %112 = vmatprep.subr.mxu0 0.0
    %113 = vmatpush1.msra.mxu0 %v86
    %114 = vmatprep.subr.mxu0 0.0
    %115 = vmatpush1.msra.mxu0 %v85
    %116 = vmatprep.subr.mxu0 0.0
    %117 = vmatpush1.msra.mxu0 %v84
    %118 = vmatprep.subr.mxu0 0.0
    %119 = vmatpush1.msra.mxu0 %v83
    %120 = vmatprep.subr.mxu0 0.0
    %121 = vmatpush1.msra.mxu0 %v82
    %122 = vmatprep.subr.mxu0 0.0
    %123 = vmatpush1.msra.mxu0 %v81
    %124 = vmatprep.subr.mxu0 0.0
    %125 = vmatpush1.msra.mxu0 %v80
    %126 = vmatprep.subr.mxu0 0.0
    %127 = vmatpush1.msra.mxu0 %v79
    %128 = vmatprep.subr.mxu0 0.0
    %129 = vmatpush1.msra.mxu0 %v78
    %130 = vmatprep.subr.mxu0 0.0
    %131 = vmatpush1.msra.mxu0 %v77
    %132 = vmatprep.subr.mxu0 0.0
    %133 = vmatpush2.msra.mxu0 0.0
    %134 = vmatprep.subr.mxu0 0.0
    %135 = vmatpush2.msra.mxu0 0.0
    %136 = vmatprep.subr.mxu0 0.0
    %137 = vmatpush2.msra.mxu0 0.0
    %138 = vmatprep.subr.mxu0 0.0
    %139 = vmatpush2.msra.mxu0 0.0
    %140 = vmatprep.subr.mxu0 0.0
    %141 = vmatpush2.msra.mxu0 0.0
    %142 = vmatprep.subr.mxu0 0.0
    %143 = vmatpush2.msra.mxu0 0.0
    %144 = vmatprep.subr.mxu0 0.0
    %145 = vmatpush2.msra.mxu0 0.0
    %146 = vmatprep.subr.mxu0 0.0
    %147 = vmatpush2.msra.mxu0 0.0
    %148 = vmatprep.subr.mxu0 0.0
    %149 = vmatpush2.msra.mxu0 0.0
    %150 = vmatprep.subr.mxu0 0.0
    %151 = vmatpush2.msra.mxu0 0.0
    %152 = vmatprep.subr.mxu0 0.0
    %153 = vmatpush2.msra.mxu0 0.0
    %154 = vmatprep.subr.mxu0 0.0
    %155 = vmatpush2.msra.mxu0 0.0
    %156 = vmatprep.subr.mxu0 0.0
    %157 = vmatpush2.msra.mxu0 0.0
    %158 = vmatprep.subr.mxu0 0.0
    %159 = vmatpush2.msra.mxu0 0.0
    %160 = vmatprep.subr.mxu0 0.0
    %161 = vmatpush2.msra.mxu0 0.0
    %162 = vmatprep.subr.mxu0 0.0
    %163 = vmatpush2.msra.mxu0 0.0
    %164 = vmatprep.mubr.f32.mxu0 0.0
    %165 = vmatmul.mubr.f32.gmra.mxu0 %v69
    %v166 = vpop.f32.mrf.mxu0
    %v167 = vadd.f32 %v98, %v166
    %v168 = vpop.f32.mrf.mxu0
    %169 = vmatprep.mubr.f32.mxu0 0.0
    %170 = vmatmul.mubr.f32.gmra.mxu0 %v70
    %v171 = vpop.f32.mrf.mxu0
    %v172 = vadd.f32 %v98, %v171
    %v173 = vpop.f32.mrf.mxu0
    %174 = vmatprep.mubr.f32.mxu0 0.0
    %175 = vmatmul.mubr.f32.gmra.mxu0 %v71
    %v176 = vpop.f32.mrf.mxu0
    %v177 = vadd.f32 %v98, %v176
    %v178 = vpop.f32.mrf.mxu0
    %179 = vmatprep.mubr.f32.mxu0 0.0
    %180 = vmatmul.mubr.f32.gmra.mxu0 %v72
    %v181 = vpop.f32.mrf.mxu0
    %v182 = vadd.f32 %v98, %v181
    %v183 = vpop.f32.mrf.mxu0
    %184 = vmatprep.mubr.f32.mxu0 0.0
    %185 = vmatmul.mubr.f32.gmra.mxu0 %v73
    %v186 = vpop.f32.mrf.mxu0
    %v187 = vadd.f32 %v98, %v186
    %v188 = vpop.f32.mrf.mxu0
    %189 = vmatprep.mubr.f32.mxu0 0.0
    %190 = vmatmul.mubr.f32.gmra.mxu0 %v74
    %v191 = vpop.f32.mrf.mxu0
    %v192 = vadd.f32 %v98, %v191
    %v193 = vpop.f32.mrf.mxu0
    %194 = vmatprep.mubr.f32.mxu0 0.0
    %195 = vmatmul.mubr.f32.gmra.mxu0 %v75
    %v196 = vpop.f32.mrf.mxu0
    %v197 = vadd.f32 %v98, %v196
    %v198 = vpop.f32.mrf.mxu0
    %199 = vmatprep.mubr.f32.mxu0 0.0
    %200 = vmatmul.mubr.f32.gmra.mxu0 %v76
    %v201 = vpop.f32.mrf.mxu0
    %v202 = vadd.f32 %v98, %v201
    %v203 = vpop.f32.mrf.mxu0
    %204 = vdwg.mxu0
    %v205 = vadd.f32 %v167, %v177
    %v206 = vadd.f32 %v205, %v187
    %v207 = vadd.f32 %v206, %v197
    %v208 = vadd.f32 %v172, %v182
    %v209 = vadd.f32 %v208, %v192
    %v210 = vadd.f32 %v209, %v202
    %211 = vadd.xlane.f32.xlu0 %v207
    %v212 = vpop.xlane.xlu0 %211
    %213 = vadd.xlane.f32.xlu0 %v210
    %v214 = vpop.xlane.xlu0 %213
    %v215 = vmul.f32 %v167, %v167
    %v216 = vmul.f32 %v172, %v172
    %v217 = vmul.f32 %v177, %v177
    %v218 = vmul.f32 %v182, %v182
    %v219 = vmul.f32 %v187, %v187
    %v220 = vmul.f32 %v192, %v192
    %v221 = vmul.f32 %v197, %v197
    %v222 = vmul.f32 %v202, %v202
    %v223 = vadd.f32 %v215, %v217
    %v224 = vadd.f32 %v223, %v219
    %v225 = vadd.f32 %v224, %v221
    %v226 = vadd.f32 %v216, %v218
    %v227 = vadd.f32 %v226, %v220
    %v228 = vadd.f32 %v227, %v222
    %229 = vadd.xlane.f32.xlu0 %v225
    %v230 = vpop.xlane.xlu0 %229
    %231 = vadd.xlane.f32.xlu0 %v228
    %v232 = vpop.xlane.xlu0 %231
    %v233 = vmul.f32 %v212, 0.001953125
    %v234 = vmul.f32 %v214, 0.001953125
    %v235 = vmul.f32 %v230, 0.001953125
    %v236 = vmul.f32 %v232, 0.001953125
    %v237 = vmul.f32 %v233, %v233
    %v238 = vmul.f32 %v234, %v234
    %v239 = vsub.f32 %v235, %v237
    %v240 = vsub.f32 %v236, %v238
    %v241 = vmax.f32 %v239, 0.0
    %v242 = vmax.f32 %v240, 0.0
    %v243 = vadd.f32 %v241, 1e-05
    %v244 = vadd.f32 %v242, 1e-05
    %v245 = vrsqrt.pop %v243
    %v246 = vrsqrt.pop %v244
    %v247 = vmul.f32 %v245, %v61
    %v248 = vmul.f32 %v246, %v62
    %v249 = vmul.f32 %v233, %v247
    %v250 = vmul.f32 %v234, %v248
    %v251 = vsub.f32 %v63, %v249
    %v252 = vsub.f32 %v64, %v250
    %254 = vset.pattern.permute.xlu0 0
    %255 = vperm.xlu0 %254, %v247
    %v256 = vpop.permute.xlu0 %255
    %259 = vset.pattern.permute.xlu0 0
    %260 = vperm.xlu0 %259, %v248
    %v261 = vpop.permute.xlu0 %260
    %v263 = vmul.f32 %v167, %v256
    %v264 = vmul.f32 %v172, %v261
    %v265 = vmul.f32 %v177, %v256
    %v266 = vmul.f32 %v182, %v261
    %v267 = vmul.f32 %v187, %v256
    %v268 = vmul.f32 %v192, %v261
    %v269 = vmul.f32 %v197, %v256
    %v270 = vmul.f32 %v202, %v261
    %272 = vset.pattern.permute.xlu0 0
    %273 = vperm.xlu0 %272, %v251
    %v274 = vpop.permute.xlu0 %273
    %277 = vset.pattern.permute.xlu0 0
    %278 = vperm.xlu0 %277, %v252
    %v279 = vpop.permute.xlu0 %278
    %v281 = vadd.f32 %v263, %v274
    %v282 = vadd.f32 %v264, %v279
    %v283 = vadd.f32 %v265, %v274
    %v284 = vadd.f32 %v266, %v279
    %v285 = vadd.f32 %v267, %v274
    %v286 = vadd.f32 %v268, %v279
    %v287 = vadd.f32 %v269, %v274
    %v288 = vadd.f32 %v270, %v279
    %v289 = vmax.f32 %v281, 0.0
    %v290 = vmax.f32 %v282, 0.0
    %v291 = vmax.f32 %v283, 0.0
    %v292 = vmax.f32 %v284, 0.0
    %v293 = vmax.f32 %v285, 0.0
    %v294 = vmax.f32 %v286, 0.0
    %v295 = vmax.f32 %v287, 0.0
    %v296 = vmax.f32 %v288, 0.0
    %v297 = vld [vmem:[#allocation5] sm:$0xff]
    %v298 = vld [vmem:[#allocation5 + $0x8] sm:$0xff]
    %v299 = vld [vmem:[#allocation5 + $0x10] sm:$0xff]
    %v300 = vld [vmem:[#allocation5 + $0x18] sm:$0xff]
    %v301 = vld [vmem:[#allocation5 + $0x20] sm:$0xff]
    %v302 = vld [vmem:[#allocation5 + $0x28] sm:$0xff]
    %v303 = vld [vmem:[#allocation5 + $0x30] sm:$0xff]
    %v304 = vld [vmem:[#allocation5 + $0x38] sm:$0xff]
    %v305 = vld [vmem:[#allocation5 + $0x40] sm:$0xff]
    %v306 = vld [vmem:[#allocation5 + $0x48] sm:$0xff]
    %v307 = vld [vmem:[#allocation5 + $0x50] sm:$0xff]
    %v308 = vld [vmem:[#allocation5 + $0x58] sm:$0xff]
    %v309 = vld [vmem:[#allocation5 + $0x60] sm:$0xff]
    %v310 = vld [vmem:[#allocation5 + $0x68] sm:$0xff]
    %v311 = vld [vmem:[#allocation5 + $0x70] sm:$0xff]
    %v312 = vld [vmem:[#allocation5 + $0x78] sm:$0xff]
    %v313 = vld [vmem:[%s6] sm:$0x1]
    %v315 = vlaneseq
    %v316 = vshrl.u32 %v315, 7
    %v317 = vsub.s32 0, %v316
    %v318 = vrot.slane %v313, %v317
    %320 = vmatprep.subr.mxu0 0.0
    %321 = vmatpush1.msra.mxu0 %v312
    %322 = vmatprep.subr.mxu0 0.0
    %323 = vmatpush1.msra.mxu0 %v311
    %324 = vmatprep.subr.mxu0 0.0
    %325 = vmatpush1.msra.mxu0 %v310
    %326 = vmatprep.subr.mxu0 0.0
    %327 = vmatpush1.msra.mxu0 %v309
    %328 = vmatprep.subr.mxu0 0.0
    %329 = vmatpush1.msra.mxu0 %v308
    %330 = vmatprep.subr.mxu0 0.0
    %331 = vmatpush1.msra.mxu0 %v307
    %332 = vmatprep.subr.mxu0 0.0
    %333 = vmatpush1.msra.mxu0 %v306
    %334 = vmatprep.subr.mxu0 0.0
    %335 = vmatpush1.msra.mxu0 %v305
    %336 = vmatprep.subr.mxu0 0.0
    %337 = vmatpush1.msra.mxu0 %v304
    %338 = vmatprep.subr.mxu0 0.0
    %339 = vmatpush1.msra.mxu0 %v303
    %340 = vmatprep.subr.mxu0 0.0
    %341 = vmatpush1.msra.mxu0 %v302
    %342 = vmatprep.subr.mxu0 0.0
    %343 = vmatpush1.msra.mxu0 %v301
    %344 = vmatprep.subr.mxu0 0.0
    %345 = vmatpush1.msra.mxu0 %v300
    %346 = vmatprep.subr.mxu0 0.0
    %347 = vmatpush1.msra.mxu0 %v299
    %348 = vmatprep.subr.mxu0 0.0
    %349 = vmatpush1.msra.mxu0 %v298
    %350 = vmatprep.subr.mxu0 0.0
    %351 = vmatpush1.msra.mxu0 %v297
    %352 = vmatprep.subr.mxu0 0.0
    %353 = vmatpush2.msra.mxu0 0.0
    %354 = vmatprep.subr.mxu0 0.0
    %355 = vmatpush2.msra.mxu0 0.0
    %356 = vmatprep.subr.mxu0 0.0
    %357 = vmatpush2.msra.mxu0 0.0
    %358 = vmatprep.subr.mxu0 0.0
    %359 = vmatpush2.msra.mxu0 0.0
    %360 = vmatprep.subr.mxu0 0.0
    %361 = vmatpush2.msra.mxu0 0.0
    %362 = vmatprep.subr.mxu0 0.0
    %363 = vmatpush2.msra.mxu0 0.0
    %364 = vmatprep.subr.mxu0 0.0
    %365 = vmatpush2.msra.mxu0 0.0
    %366 = vmatprep.subr.mxu0 0.0
    %367 = vmatpush2.msra.mxu0 0.0
    %368 = vmatprep.subr.mxu0 0.0
    %369 = vmatpush2.msra.mxu0 0.0
    %370 = vmatprep.subr.mxu0 0.0
    %371 = vmatpush2.msra.mxu0 0.0
    %372 = vmatprep.subr.mxu0 0.0
    %373 = vmatpush2.msra.mxu0 0.0
    %374 = vmatprep.subr.mxu0 0.0
    %375 = vmatpush2.msra.mxu0 0.0
    %376 = vmatprep.subr.mxu0 0.0
    %377 = vmatpush2.msra.mxu0 0.0
    %378 = vmatprep.subr.mxu0 0.0
    %379 = vmatpush2.msra.mxu0 0.0
    %380 = vmatprep.subr.mxu0 0.0
    %381 = vmatpush2.msra.mxu0 0.0
    %382 = vmatprep.subr.mxu0 0.0
    %383 = vmatpush2.msra.mxu0 0.0
    %384 = vmatprep.mubr.f32.mxu0 0.0
    %385 = vmatmul.mubr.f32.gmra.mxu0 %v289
    %v386 = vpop.f32.mrf.mxu0
    %v387 = vadd.f32 %v318, %v386
    %v388 = vpop.f32.mrf.mxu0
    %389 = vmatprep.mubr.f32.mxu0 0.0
    %390 = vmatmul.mubr.f32.gmra.mxu0 %v290
    %v391 = vpop.f32.mrf.mxu0
    %v392 = vadd.f32 %v318, %v391
    %v393 = vpop.f32.mrf.mxu0
    %394 = vmatprep.mubr.f32.mxu0 0.0
    %395 = vmatmul.mubr.f32.gmra.mxu0 %v291
    %v396 = vpop.f32.mrf.mxu0
    %v397 = vadd.f32 %v318, %v396
    %v398 = vpop.f32.mrf.mxu0
    %399 = vmatprep.mubr.f32.mxu0 0.0
    %400 = vmatmul.mubr.f32.gmra.mxu0 %v292
    %v401 = vpop.f32.mrf.mxu0
    %v402 = vadd.f32 %v318, %v401
    %v403 = vpop.f32.mrf.mxu0
    %404 = vmatprep.mubr.f32.mxu0 0.0
    %405 = vmatmul.mubr.f32.gmra.mxu0 %v293
    %v406 = vpop.f32.mrf.mxu0
    %v407 = vadd.f32 %v318, %v406
    %v408 = vpop.f32.mrf.mxu0
    %409 = vmatprep.mubr.f32.mxu0 0.0
    %410 = vmatmul.mubr.f32.gmra.mxu0 %v294
    %v411 = vpop.f32.mrf.mxu0
    %v412 = vadd.f32 %v318, %v411
    %v413 = vpop.f32.mrf.mxu0
    %414 = vmatprep.mubr.f32.mxu0 0.0
    %415 = vmatmul.mubr.f32.gmra.mxu0 %v295
    %v416 = vpop.f32.mrf.mxu0
    %v417 = vadd.f32 %v318, %v416
    %v418 = vpop.f32.mrf.mxu0
    %419 = vmatprep.mubr.f32.mxu0 0.0
    %420 = vmatmul.mubr.f32.gmra.mxu0 %v296
    %v421 = vpop.f32.mrf.mxu0
    %v422 = vadd.f32 %v318, %v421
    %v423 = vpop.f32.mrf.mxu0
    %424 = vdwg.mxu0
    %v425 = vadd.f32 %v387, %v397
    %v426 = vadd.f32 %v425, %v407
    %v427 = vadd.f32 %v426, %v417
    %v428 = vadd.f32 %v392, %v402
    %v429 = vadd.f32 %v428, %v412
    %v430 = vadd.f32 %v429, %v422
    %431 = vadd.xlane.f32.xlu0 %v427
    %v432 = vpop.xlane.xlu0 %431
    %433 = vadd.xlane.f32.xlu0 %v430
    %v434 = vpop.xlane.xlu0 %433
    %v435 = vmul.f32 %v387, %v387
    %v436 = vmul.f32 %v392, %v392
    %v437 = vmul.f32 %v397, %v397
    %v438 = vmul.f32 %v402, %v402
    %v439 = vmul.f32 %v407, %v407
    %v440 = vmul.f32 %v412, %v412
    %v441 = vmul.f32 %v417, %v417
    %v442 = vmul.f32 %v422, %v422
    %v443 = vadd.f32 %v435, %v437
    %v444 = vadd.f32 %v443, %v439
    %v445 = vadd.f32 %v444, %v441
    %v446 = vadd.f32 %v436, %v438
    %v447 = vadd.f32 %v446, %v440
    %v448 = vadd.f32 %v447, %v442
    %449 = vadd.xlane.f32.xlu0 %v445
    %v450 = vpop.xlane.xlu0 %449
    %451 = vadd.xlane.f32.xlu0 %v448
    %v452 = vpop.xlane.xlu0 %451
    %v453 = vmul.f32 %v432, 0.001953125
    %v454 = vmul.f32 %v434, 0.001953125
    %v455 = vmul.f32 %v450, 0.001953125
    %v456 = vmul.f32 %v452, 0.001953125
    %v457 = vmul.f32 %v453, %v453
    %v458 = vmul.f32 %v454, %v454
    %v459 = vsub.f32 %v455, %v457
    %v460 = vsub.f32 %v456, %v458
    %v461 = vmax.f32 %v459, 0.0
    %v462 = vmax.f32 %v460, 0.0
    %v463 = vadd.f32 %v461, 1e-05
    %v464 = vadd.f32 %v462, 1e-05
    %v465 = vrsqrt.pop %v463
    %v466 = vrsqrt.pop %v464
    %v467 = vmul.f32 %v465, %v65
    %v468 = vmul.f32 %v466, %v66
    %v469 = vmul.f32 %v453, %v467
    %v470 = vmul.f32 %v454, %v468
    %v471 = vsub.f32 %v67, %v469
    %v472 = vsub.f32 %v68, %v470
    %474 = vset.pattern.permute.xlu0 0
    %475 = vperm.xlu0 %474, %v467
    %v476 = vpop.permute.xlu0 %475
    %479 = vset.pattern.permute.xlu0 0
    %480 = vperm.xlu0 %479, %v468
    %v481 = vpop.permute.xlu0 %480
    %v483 = vmul.f32 %v387, %v476
    %v484 = vmul.f32 %v392, %v481
    %v485 = vmul.f32 %v397, %v476
    %v486 = vmul.f32 %v402, %v481
    %v487 = vmul.f32 %v407, %v476
    %v488 = vmul.f32 %v412, %v481
    %v489 = vmul.f32 %v417, %v476
    %v490 = vmul.f32 %v422, %v481
    %492 = vset.pattern.permute.xlu0 0
    %493 = vperm.xlu0 %492, %v471
    %v494 = vpop.permute.xlu0 %493
    %497 = vset.pattern.permute.xlu0 0
    %498 = vperm.xlu0 %497, %v472
    %v499 = vpop.permute.xlu0 %498
    %v501 = vadd.f32 %v483, %v494
    %v502 = vadd.f32 %v484, %v499
    %v503 = vadd.f32 %v485, %v494
    %v504 = vadd.f32 %v486, %v499
    %v505 = vadd.f32 %v487, %v494
    %v506 = vadd.f32 %v488, %v499
    %v507 = vadd.f32 %v489, %v494
    %v508 = vadd.f32 %v490, %v499
    %v509 = vmax.f32 %v501, 0.0
    %v510 = vmax.f32 %v502, 0.0
    %v511 = vmax.f32 %v503, 0.0
    %v512 = vmax.f32 %v504, 0.0
    %v513 = vmax.f32 %v505, 0.0
    %v514 = vmax.f32 %v506, 0.0
    %v515 = vmax.f32 %v507, 0.0
    %v516 = vmax.f32 %v508, 0.0
    %517 = vst [vmem:[#allocation7] sm:$0xff] %v509
    %518 = vst [vmem:[#allocation7 + $0x8] sm:$0xff] %v510
    %519 = vst [vmem:[#allocation7 + $0x10] sm:$0xff] %v511
    %520 = vst [vmem:[#allocation7 + $0x18] sm:$0xff] %v512
    %521 = vst [vmem:[#allocation7 + $0x20] sm:$0xff] %v513
    %522 = vst [vmem:[#allocation7 + $0x28] sm:$0xff] %v514
    %523 = vst [vmem:[#allocation7 + $0x30] sm:$0xff] %v515
    %524 = vst [vmem:[#allocation7 + $0x38] sm:$0xff] %v516
    // Predicated region
    $region46: #{tpu_custom_call.1} parent=1 // pred_check
      _
    $region47: #{tpu_custom_call.1} parent=1 // pred_check_branch
      %526 = sbr.rel (0) target = $region49
    $region48: #{tpu_custom_call.1} parent=1 // pred_region
      %s528 = ssub.s32 1024, 1024
      %529 = vsyncadd [#allocation4], %s528
      %s530 = sshll.u32 [#allocation7], 4
      %s531 = int_to_ptr.vmem [resolvable:$true] %s530
      %536 = dma.vmem_to_hbm [thread:$0]  %s531, 1024, %s9, [#allocation4], 128, 128, 8
    $region49: #{tpu_custom_call.1} parent=1 // pred_fallthru
      _
    // Predicated region
    $region50: #{tpu_custom_call.1} parent=1 // pred_check
      _
    $region51: #{tpu_custom_call.1} parent=1 // pred_check_branch
      %538 = sbr.rel (0) target = $region53
    $region52: #{tpu_custom_call.1} parent=1 // pred_region
      %539 = dma.done [#allocation4], 1024
    $region53: #{tpu_custom_call.1} parent=1 // pred_fallthru
      _
    %540 = vsyncpa [#allocation3], 1
    %541 = vsyncpa [#allocation6], 1
    %542 = vsyncpa [#allocation4], 1

// kernel: tpu_custom_call.1
$region0: #{tpu_custom_call.1}
  #allocation0 [shape = 'u32[]', space=smem, size = 0x4, offset = 0x4, fixed_abs, tag = 'smem constant byte address 0x4 - core index']
  #allocation1 [shape = 'u32[144,128]{1,0:T(1,128)}', space=vmem, size = 0x12000, scoped, tag = 'internal scratch']
  %s0 = inlined_call_operand.vmem [shape: f32[4,16,128], index: 0, kind: input, shape index: {}]
  %s1 = inlined_call_operand.hbm [shape: f32[128,128], index: 1, kind: input, shape index: {}]
  %s2 = inlined_call_operand.vmem [shape: f32[1,128], index: 2, kind: input, shape index: {}]
  %s3 = inlined_call_operand.vmem [shape: f32[1,16,1], index: 3, kind: input, shape index: {}]
  %s4 = inlined_call_operand.vmem [shape: f32[1,16,1], index: 4, kind: input, shape index: {}]
  %s5 = inlined_call_operand.hbm [shape: f32[128,128], index: 5, kind: input, shape index: {}]
  %s6 = inlined_call_operand.vmem [shape: f32[1,128], index: 6, kind: input, shape index: {}]
  %s7 = inlined_call_operand.vmem [shape: f32[1,16,1], index: 7, kind: input, shape index: {}]
  %s8 = inlined_call_operand.vmem [shape: f32[1,16,1], index: 8, kind: input, shape index: {}]
  %s9 = inlined_call_operand.hbm [shape: f32[4,16,128], index: 9, kind: output, shape index: {}]
  %s10 = sld [smem:[#allocation0]]
  $region54: #{tpu_custom_call.1} parent=0
    _
  %s12 = ssub.s32 1, %s10
  %s13 = scalar_select 0, %s12, %s10
  $region1: #{tpu_custom_call.1} parent=0
    #allocation2 [shape = 'u8[65536]{0}', space=vmem, size = 0x10000, scoped, tag = 'input window, operand 1, single buffered']
    #allocation3 [shape = 's32[1]{0}', space=sflag, size = 0x4, scoped, tag = 'scoped memory for tpu_custom_call.1']
    #allocation4 [shape = 's32[1]{0}', space=sflag, size = 0x4, scoped, tag = 'scoped memory for tpu_custom_call.1']
    #allocation5 [shape = 'u8[65536]{0}', space=vmem, size = 0x10000, scoped, tag = 'input window, operand 5, single buffered']
    #allocation6 [shape = 's32[1]{0}', space=sflag, size = 0x4, scoped, tag = 'scoped memory for tpu_custom_call.1']
    #allocation7 [shape = 'u8[32768]{0}', space=vmem, size = 0x8000, scoped, tag = 'output window, operand 0, single buffered']
    %14 = vsyncpa [#allocation3], 0
    %15 = vsyncpa [#allocation6], 0
    %16 = vsyncpa [#allocation4], 0
    // Predicated region
    $region2: #{tpu_custom_call.1} parent=1 // pred_check
      _
    $region3: #{tpu_custom_call.1} parent=1 // pred_check_branch
      %18 = sbr.rel (0) target = $region5
    $region4: #{tpu_custom_call.1} parent=1 // pred_region
      _
    $region5: #{tpu_custom_call.1} parent=1 // pred_fallthru
      _
    // Predicated region
    $region6: #{tpu_custom_call.1} parent=1 // pred_check
      _
    $region7: #{tpu_custom_call.1} parent=1 // pred_check_branch
      %20 = sbr.rel (0) target = $region9
    $region8: #{tpu_custom_call.1} parent=1 // pred_region
      %s22 = ssub.s32 2048, 2048
      %23 = vsyncadd [#allocation3], %s22
      %s24 = sshll.u32 [#allocation2], 4
      %s25 = int_to_ptr.vmem [resolvable:$true] %s24
      %30 = dma.hbm_to_vmem [thread:$0]  %s1, 2048, %s25, [#allocation3], 128, 128, 8
    $region9: #{tpu_custom_call.1} parent=1 // pred_fallthru
      _
    // Predicated region
    $region10: #{tpu_custom_call.1} parent=1 // pred_check
      _
    $region11: #{tpu_custom_call.1} parent=1 // pred_check_branch
      %32 = sbr.rel (0) target = $region13
    $region12: #{tpu_custom_call.1} parent=1 // pred_region
      _
    $region13: #{tpu_custom_call.1} parent=1 // pred_fallthru
      _
    // Predicated region
    $region14: #{tpu_custom_call.1} parent=1 // pred_check
      _
    $region15: #{tpu_custom_call.1} parent=1 // pred_check_branch
      %34 = sbr.rel (0) target = $region17
    $region16: #{tpu_custom_call.1} parent=1 // pred_region
      _
    $region17: #{tpu_custom_call.1} parent=1 // pred_fallthru
      _
    // Predicated region
    $region18: #{tpu_custom_call.1} parent=1 // pred_check
      _
    $region19: #{tpu_custom_call.1} parent=1 // pred_check_branch
      %36 = sbr.rel (0) target = $region21
    $region20: #{tpu_custom_call.1} parent=1 // pred_region
      _
    $region21: #{tpu_custom_call.1} parent=1 // pred_fallthru
      _
    // Predicated region
    $region22: #{tpu_custom_call.1} parent=1 // pred_check
      _
    $region23: #{tpu_custom_call.1} parent=1 // pred_check_branch
      %38 = sbr.rel (0) target = $region25
    $region24: #{tpu_custom_call.1} parent=1 // pred_region
      %s40 = ssub.s32 2048, 2048
      %41 = vsyncadd [#allocation6], %s40
      %s42 = sshll.u32 [#allocation5], 4
      %s43 = int_to_ptr.vmem [resolvable:$true] %s42
      %48 = dma.hbm_to_vmem [thread:$0]  %s5, 2048, %s43, [#allocation6], 128, 128, 8
    $region25: #{tpu_custom_call.1} parent=1 // pred_fallthru
      _
    // Predicated region
    $region26: #{tpu_custom_call.1} parent=1 // pred_check
      _
    $region27: #{tpu_custom_call.1} parent=1 // pred_check_branch
      %50 = sbr.rel (0) target = $region29
    $region28: #{tpu_custom_call.1} parent=1 // pred_region
      _
    $region29: #{tpu_custom_call.1} parent=1 // pred_fallthru
      _
    // Predicated region
    $region30: #{tpu_custom_call.1} parent=1 // pred_check
      _
    $region31: #{tpu_custom_call.1} parent=1 // pred_check_branch
      %52 = sbr.rel (0) target = $region33
    $region32: #{tpu_custom_call.1} parent=1 // pred_region
      _
    $region33: #{tpu_custom_call.1} parent=1 // pred_fallthru
      _
    // Predicated region
    $region34: #{tpu_custom_call.1} parent=1 // pred_check
      _
    $region35: #{tpu_custom_call.1} parent=1 // pred_check_branch
      %54 = sbr.rel (0) target = $region37
    $region36: #{tpu_custom_call.1} parent=1 // pred_region
      _
    $region37: #{tpu_custom_call.1} parent=1 // pred_fallthru
      _
    // Predicated region
    $region38: #{tpu_custom_call.1} parent=1 // pred_check
      _
    $region39: #{tpu_custom_call.1} parent=1 // pred_check_branch
      %56 = sbr.rel (0) target = $region41
    $region40: #{tpu_custom_call.1} parent=1 // pred_region
      %57 = dma.done [#allocation3], 2048
    $region41: #{tpu_custom_call.1} parent=1 // pred_fallthru
      _
    // Predicated region
    $region42: #{tpu_custom_call.1} parent=1 // pred_check
      _
    $region43: #{tpu_custom_call.1} parent=1 // pred_check_branch
      %59 = sbr.rel (0) target = $region45
    $region44: #{tpu_custom_call.1} parent=1 // pred_region
      %60 = dma.done [#allocation6], 2048
    $region45: #{tpu_custom_call.1} parent=1 // pred_fallthru
      _
    %v61 = vld [vmem:[%s3] sm:$0xff]
    %v62 = vld [vmem:[%s3 + $0x8] sm:$0xff]
    %v63 = vld [vmem:[%s4] sm:$0xff]
    %v64 = vld [vmem:[%s4 + $0x8] sm:$0xff]
    %v65 = vld [vmem:[%s7] sm:$0xff]
    %v66 = vld [vmem:[%s7 + $0x8] sm:$0xff]
    %v67 = vld [vmem:[%s8] sm:$0xff]
    %v68 = vld [vmem:[%s8 + $0x8] sm:$0xff]
    %v69 = vld [vmem:[%s0] sm:$0xff]
    %v70 = vld [vmem:[%s0 + $0x8] sm:$0xff]
    %v71 = vld [vmem:[%s0 + $0x10] sm:$0xff]
    %v72 = vld [vmem:[%s0 + $0x18] sm:$0xff]
    %v73 = vld [vmem:[%s0 + $0x20] sm:$0xff]
    %v74 = vld [vmem:[%s0 + $0x28] sm:$0xff]
    %v75 = vld [vmem:[%s0 + $0x30] sm:$0xff]
    %v76 = vld [vmem:[%s0 + $0x38] sm:$0xff]
    %v77 = vld [vmem:[#allocation2] sm:$0xff]
    %v78 = vld [vmem:[#allocation2 + $0x8] sm:$0xff]
    %v79 = vld [vmem:[#allocation2 + $0x10] sm:$0xff]
    %v80 = vld [vmem:[#allocation2 + $0x18] sm:$0xff]
    %v81 = vld [vmem:[#allocation2 + $0x20] sm:$0xff]
    %v82 = vld [vmem:[#allocation2 + $0x28] sm:$0xff]
    %v83 = vld [vmem:[#allocation2 + $0x30] sm:$0xff]
    %v84 = vld [vmem:[#allocation2 + $0x38] sm:$0xff]
    %v85 = vld [vmem:[#allocation2 + $0x40] sm:$0xff]
    %v86 = vld [vmem:[#allocation2 + $0x48] sm:$0xff]
    %v87 = vld [vmem:[#allocation2 + $0x50] sm:$0xff]
    %v88 = vld [vmem:[#allocation2 + $0x58] sm:$0xff]
    %v89 = vld [vmem:[#allocation2 + $0x60] sm:$0xff]
    %v90 = vld [vmem:[#allocation2 + $0x68] sm:$0xff]
    %v91 = vld [vmem:[#allocation2 + $0x70] sm:$0xff]
    %v92 = vld [vmem:[#allocation2 + $0x78] sm:$0xff]
    %v93 = vld [vmem:[%s2] sm:$0x1]
    %v95 = vlaneseq
    %v96 = vshrl.u32 %v95, 7
    %v97 = vsub.s32 0, %v96
    %v98 = vrot.slane %v93, %v97
    %100 = vmatprep.subr.mxu0 0.0
    %101 = vmatpush1.msra.mxu0 %v92
    %102 = vmatprep.subr.mxu0 0.0
    %103 = vmatpush1.msra.mxu0 %v91
    %104 = vmatprep.subr.mxu0 0.0
    %105 = vmatpush1.msra.mxu0 %v90
    %106 = vmatprep.subr.mxu0 0.0
    %107 = vmatpush1.msra.mxu0 %v89
    %108 = vmatprep.subr.mxu0 0.0
    %109 = vmatpush1.msra.mxu0 %v88
    %110 = vmatprep.subr.mxu0 0.0
    %111 = vmatpush1.msra.mxu0 %v87
    %112 = vmatprep.subr.mxu0 0.0
    %113 = vmatpush1.msra.mxu0 %v86
    %114 = vmatprep.subr.mxu0 0.0
    %115 = vmatpush1.msra.mxu0 %v85
    %116 = vmatprep.subr.mxu0 0.0
    %117 = vmatpush1.msra.mxu0 %v84
    %118 = vmatprep.subr.mxu0 0.0
    %119 = vmatpush1.msra.mxu0 %v83
    %120 = vmatprep.subr.mxu0 0.0
    %121 = vmatpush1.msra.mxu0 %v82
    %122 = vmatprep.subr.mxu0 0.0
    %123 = vmatpush1.msra.mxu0 %v81
    %124 = vmatprep.subr.mxu0 0.0
    %125 = vmatpush1.msra.mxu0 %v80
    %126 = vmatprep.subr.mxu0 0.0
    %127 = vmatpush1.msra.mxu0 %v79
    %128 = vmatprep.subr.mxu0 0.0
    %129 = vmatpush1.msra.mxu0 %v78
    %130 = vmatprep.subr.mxu0 0.0
    %131 = vmatpush1.msra.mxu0 %v77
    %132 = vmatprep.subr.mxu0 0.0
    %133 = vmatpush2.msra.mxu0 0.0
    %134 = vmatprep.subr.mxu0 0.0
    %135 = vmatpush2.msra.mxu0 0.0
    %136 = vmatprep.subr.mxu0 0.0
    %137 = vmatpush2.msra.mxu0 0.0
    %138 = vmatprep.subr.mxu0 0.0
    %139 = vmatpush2.msra.mxu0 0.0
    %140 = vmatprep.subr.mxu0 0.0
    %141 = vmatpush2.msra.mxu0 0.0
    %142 = vmatprep.subr.mxu0 0.0
    %143 = vmatpush2.msra.mxu0 0.0
    %144 = vmatprep.subr.mxu0 0.0
    %145 = vmatpush2.msra.mxu0 0.0
    %146 = vmatprep.subr.mxu0 0.0
    %147 = vmatpush2.msra.mxu0 0.0
    %148 = vmatprep.subr.mxu0 0.0
    %149 = vmatpush2.msra.mxu0 0.0
    %150 = vmatprep.subr.mxu0 0.0
    %151 = vmatpush2.msra.mxu0 0.0
    %152 = vmatprep.subr.mxu0 0.0
    %153 = vmatpush2.msra.mxu0 0.0
    %154 = vmatprep.subr.mxu0 0.0
    %155 = vmatpush2.msra.mxu0 0.0
    %156 = vmatprep.subr.mxu0 0.0
    %157 = vmatpush2.msra.mxu0 0.0
    %158 = vmatprep.subr.mxu0 0.0
    %159 = vmatpush2.msra.mxu0 0.0
    %160 = vmatprep.subr.mxu0 0.0
    %161 = vmatpush2.msra.mxu0 0.0
    %162 = vmatprep.subr.mxu0 0.0
    %163 = vmatpush2.msra.mxu0 0.0
    %164 = vmatprep.mubr.f32.mxu0 0.0
    %165 = vmatmul.mubr.f32.gmra.mxu0 %v69
    %v166 = vpop.f32.mrf.mxu0
    %v167 = vadd.f32 %v98, %v166
    %v168 = vpop.f32.mrf.mxu0
    %169 = vmatprep.mubr.f32.mxu0 0.0
    %170 = vmatmul.mubr.f32.gmra.mxu0 %v70
    %v171 = vpop.f32.mrf.mxu0
    %v172 = vadd.f32 %v98, %v171
    %v173 = vpop.f32.mrf.mxu0
    %174 = vmatprep.mubr.f32.mxu0 0.0
    %175 = vmatmul.mubr.f32.gmra.mxu0 %v71
    %v176 = vpop.f32.mrf.mxu0
    %v177 = vadd.f32 %v98, %v176
    %v178 = vpop.f32.mrf.mxu0
    %179 = vmatprep.mubr.f32.mxu0 0.0
    %180 = vmatmul.mubr.f32.gmra.mxu0 %v72
    %v181 = vpop.f32.mrf.mxu0
    %v182 = vadd.f32 %v98, %v181
    %v183 = vpop.f32.mrf.mxu0
    %184 = vmatprep.mubr.f32.mxu0 0.0
    %185 = vmatmul.mubr.f32.gmra.mxu0 %v73
    %v186 = vpop.f32.mrf.mxu0
    %v187 = vadd.f32 %v98, %v186
    %v188 = vpop.f32.mrf.mxu0
    %189 = vmatprep.mubr.f32.mxu0 0.0
    %190 = vmatmul.mubr.f32.gmra.mxu0 %v74
    %v191 = vpop.f32.mrf.mxu0
    %v192 = vadd.f32 %v98, %v191
    %v193 = vpop.f32.mrf.mxu0
    %194 = vmatprep.mubr.f32.mxu0 0.0
    %195 = vmatmul.mubr.f32.gmra.mxu0 %v75
    %v196 = vpop.f32.mrf.mxu0
    %v197 = vadd.f32 %v98, %v196
    %v198 = vpop.f32.mrf.mxu0
    %199 = vmatprep.mubr.f32.mxu0 0.0
    %200 = vmatmul.mubr.f32.gmra.mxu0 %v76
    %v201 = vpop.f32.mrf.mxu0
    %v202 = vadd.f32 %v98, %v201
    %v203 = vpop.f32.mrf.mxu0
    %204 = vdwg.mxu0
    %v205 = vadd.f32 %v167, %v177
    %v206 = vadd.f32 %v205, %v187
    %v207 = vadd.f32 %v206, %v197
    %v208 = vadd.f32 %v172, %v182
    %v209 = vadd.f32 %v208, %v192
    %v210 = vadd.f32 %v209, %v202
    %211 = vadd.xlane.f32.xlu0 %v207
    %v212 = vpop.xlane.xlu0 %211
    %213 = vadd.xlane.f32.xlu0 %v210
    %v214 = vpop.xlane.xlu0 %213
    %v215 = vmul.f32 %v167, %v167
    %v216 = vmul.f32 %v172, %v172
    %v217 = vmul.f32 %v177, %v177
    %v218 = vmul.f32 %v182, %v182
    %v219 = vmul.f32 %v187, %v187
    %v220 = vmul.f32 %v192, %v192
    %v221 = vmul.f32 %v197, %v197
    %v222 = vmul.f32 %v202, %v202
    %v223 = vadd.f32 %v215, %v217
    %v224 = vadd.f32 %v223, %v219
    %v225 = vadd.f32 %v224, %v221
    %v226 = vadd.f32 %v216, %v218
    %v227 = vadd.f32 %v226, %v220
    %v228 = vadd.f32 %v227, %v222
    %229 = vadd.xlane.f32.xlu0 %v225
    %v230 = vpop.xlane.xlu0 %229
    %231 = vadd.xlane.f32.xlu0 %v228
    %v232 = vpop.xlane.xlu0 %231
    %v233 = vmul.f32 %v212, 0.001953125
    %v234 = vmul.f32 %v214, 0.001953125
    %v235 = vmul.f32 %v230, 0.001953125
    %v236 = vmul.f32 %v232, 0.001953125
    %v237 = vmul.f32 %v233, %v233
    %v238 = vmul.f32 %v234, %v234
    %v239 = vsub.f32 %v235, %v237
    %v240 = vsub.f32 %v236, %v238
    %v241 = vmax.f32 %v239, 0.0
    %v242 = vmax.f32 %v240, 0.0
    %v243 = vadd.f32 %v241, 1e-05
    %v244 = vadd.f32 %v242, 1e-05
    %v245 = vrsqrt.pop %v243
    %v246 = vrsqrt.pop %v244
    %v247 = vmul.f32 %v245, %v61
    %v248 = vmul.f32 %v246, %v62
    %v249 = vmul.f32 %v233, %v247
    %v250 = vmul.f32 %v234, %v248
    %v251 = vsub.f32 %v63, %v249
    %v252 = vsub.f32 %v64, %v250
    %254 = vset.pattern.permute.xlu0 0
    %255 = vperm.xlu0 %254, %v247
    %v256 = vpop.permute.xlu0 %255
    %259 = vset.pattern.permute.xlu0 0
    %260 = vperm.xlu0 %259, %v248
    %v261 = vpop.permute.xlu0 %260
    %v263 = vmul.f32 %v167, %v256
    %v264 = vmul.f32 %v172, %v261
    %v265 = vmul.f32 %v177, %v256
    %v266 = vmul.f32 %v182, %v261
    %v267 = vmul.f32 %v187, %v256
    %v268 = vmul.f32 %v192, %v261
    %v269 = vmul.f32 %v197, %v256
    %v270 = vmul.f32 %v202, %v261
    %272 = vset.pattern.permute.xlu0 0
    %273 = vperm.xlu0 %272, %v251
    %v274 = vpop.permute.xlu0 %273
    %277 = vset.pattern.permute.xlu0 0
    %278 = vperm.xlu0 %277, %v252
    %v279 = vpop.permute.xlu0 %278
    %v281 = vadd.f32 %v263, %v274
    %v282 = vadd.f32 %v264, %v279
    %v283 = vadd.f32 %v265, %v274
    %v284 = vadd.f32 %v266, %v279
    %v285 = vadd.f32 %v267, %v274
    %v286 = vadd.f32 %v268, %v279
    %v287 = vadd.f32 %v269, %v274
    %v288 = vadd.f32 %v270, %v279
    %v289 = vmax.f32 %v281, 0.0
    %v290 = vmax.f32 %v282, 0.0
    %v291 = vmax.f32 %v283, 0.0
    %v292 = vmax.f32 %v284, 0.0
    %v293 = vmax.f32 %v285, 0.0
    %v294 = vmax.f32 %v286, 0.0
    %v295 = vmax.f32 %v287, 0.0
    %v296 = vmax.f32 %v288, 0.0
    %v297 = vld [vmem:[#allocation5] sm:$0xff]
    %v298 = vld [vmem:[#allocation5 + $0x8] sm:$0xff]
    %v299 = vld [vmem:[#allocation5 + $0x10] sm:$0xff]
    %v300 = vld [vmem:[#allocation5 + $0x18] sm:$0xff]
    %v301 = vld [vmem:[#allocation5 + $0x20] sm:$0xff]
    %v302 = vld [vmem:[#allocation5 + $0x28] sm:$0xff]
    %v303 = vld [vmem:[#allocation5 + $0x30] sm:$0xff]
    %v304 = vld [vmem:[#allocation5 + $0x38] sm:$0xff]
    %v305 = vld [vmem:[#allocation5 + $0x40] sm:$0xff]
    %v306 = vld [vmem:[#allocation5 + $0x48] sm:$0xff]
    %v307 = vld [vmem:[#allocation5 + $0x50] sm:$0xff]
    %v308 = vld [vmem:[#allocation5 + $0x58] sm:$0xff]
    %v309 = vld [vmem:[#allocation5 + $0x60] sm:$0xff]
    %v310 = vld [vmem:[#allocation5 + $0x68] sm:$0xff]
    %v311 = vld [vmem:[#allocation5 + $0x70] sm:$0xff]
    %v312 = vld [vmem:[#allocation5 + $0x78] sm:$0xff]
    %v313 = vld [vmem:[%s6] sm:$0x1]
    %v315 = vlaneseq
    %v316 = vshrl.u32 %v315, 7
    %v317 = vsub.s32 0, %v316
    %v318 = vrot.slane %v313, %v317
    %320 = vmatprep.subr.mxu0 0.0
    %321 = vmatpush1.msra.mxu0 %v312
    %322 = vmatprep.subr.mxu0 0.0
    %323 = vmatpush1.msra.mxu0 %v311
    %324 = vmatprep.subr.mxu0 0.0
    %325 = vmatpush1.msra.mxu0 %v310
    %326 = vmatprep.subr.mxu0 0.0
    %327 = vmatpush1.msra.mxu0 %v309
    %328 = vmatprep.subr.mxu0 0.0
    %329 = vmatpush1.msra.mxu0 %v308
    %330 = vmatprep.subr.mxu0 0.0
    %331 = vmatpush1.msra.mxu0 %v307
    %332 = vmatprep.subr.mxu0 0.0
    %333 = vmatpush1.msra.mxu0 %v306
    %334 = vmatprep.subr.mxu0 0.0
    %335 = vmatpush1.msra.mxu0 %v305
    %336 = vmatprep.subr.mxu0 0.0
    %337 = vmatpush1.msra.mxu0 %v304
    %338 = vmatprep.subr.mxu0 0.0
    %339 = vmatpush1.msra.mxu0 %v303
    %340 = vmatprep.subr.mxu0 0.0
    %341 = vmatpush1.msra.mxu0 %v302
    %342 = vmatprep.subr.mxu0 0.0
    %343 = vmatpush1.msra.mxu0 %v301
    %344 = vmatprep.subr.mxu0 0.0
    %345 = vmatpush1.msra.mxu0 %v300
    %346 = vmatprep.subr.mxu0 0.0
    %347 = vmatpush1.msra.mxu0 %v299
    %348 = vmatprep.subr.mxu0 0.0
    %349 = vmatpush1.msra.mxu0 %v298
    %350 = vmatprep.subr.mxu0 0.0
    %351 = vmatpush1.msra.mxu0 %v297
    %352 = vmatprep.subr.mxu0 0.0
    %353 = vmatpush2.msra.mxu0 0.0
    %354 = vmatprep.subr.mxu0 0.0
    %355 = vmatpush2.msra.mxu0 0.0
    %356 = vmatprep.subr.mxu0 0.0
    %357 = vmatpush2.msra.mxu0 0.0
    %358 = vmatprep.subr.mxu0 0.0
    %359 = vmatpush2.msra.mxu0 0.0
    %360 = vmatprep.subr.mxu0 0.0
    %361 = vmatpush2.msra.mxu0 0.0
    %362 = vmatprep.subr.mxu0 0.0
    %363 = vmatpush2.msra.mxu0 0.0
    %364 = vmatprep.subr.mxu0 0.0
    %365 = vmatpush2.msra.mxu0 0.0
    %366 = vmatprep.subr.mxu0 0.0
    %367 = vmatpush2.msra.mxu0 0.0
    %368 = vmatprep.subr.mxu0 0.0
    %369 = vmatpush2.msra.mxu0 0.0
    %370 = vmatprep.subr.mxu0 0.0
    %371 = vmatpush2.msra.mxu0 0.0
    %372 = vmatprep.subr.mxu0 0.0
    %373 = vmatpush2.msra.mxu0 0.0
    %374 = vmatprep.subr.mxu0 0.0
    %375 = vmatpush2.msra.mxu0 0.0
    %376 = vmatprep.subr.mxu0 0.0
    %377 = vmatpush2.msra.mxu0 0.0
    %378 = vmatprep.subr.mxu0 0.0
    %379 = vmatpush2.msra.mxu0 0.0
    %380 = vmatprep.subr.mxu0 0.0
    %381 = vmatpush2.msra.mxu0 0.0
    %382 = vmatprep.subr.mxu0 0.0
    %383 = vmatpush2.msra.mxu0 0.0
    %384 = vmatprep.mubr.f32.mxu0 0.0
    %385 = vmatmul.mubr.f32.gmra.mxu0 %v289
    %v386 = vpop.f32.mrf.mxu0
    %v387 = vadd.f32 %v318, %v386
    %v388 = vpop.f32.mrf.mxu0
    %389 = vmatprep.mubr.f32.mxu0 0.0
    %390 = vmatmul.mubr.f32.gmra.mxu0 %v290
    %v391 = vpop.f32.mrf.mxu0
    %v392 = vadd.f32 %v318, %v391
    %v393 = vpop.f32.mrf.mxu0
    %394 = vmatprep.mubr.f32.mxu0 0.0
    %395 = vmatmul.mubr.f32.gmra.mxu0 %v291
    %v396 = vpop.f32.mrf.mxu0
    %v397 = vadd.f32 %v318, %v396
    %v398 = vpop.f32.mrf.mxu0
    %399 = vmatprep.mubr.f32.mxu0 0.0
    %400 = vmatmul.mubr.f32.gmra.mxu0 %v292
    %v401 = vpop.f32.mrf.mxu0
    %v402 = vadd.f32 %v318, %v401
    %v403 = vpop.f32.mrf.mxu0
    %404 = vmatprep.mubr.f32.mxu0 0.0
    %405 = vmatmul.mubr.f32.gmra.mxu0 %v293
    %v406 = vpop.f32.mrf.mxu0
    %v407 = vadd.f32 %v318, %v406
    %v408 = vpop.f32.mrf.mxu0
    %409 = vmatprep.mubr.f32.mxu0 0.0
    %410 = vmatmul.mubr.f32.gmra.mxu0 %v294
    %v411 = vpop.f32.mrf.mxu0
    %v412 = vadd.f32 %v318, %v411
    %v413 = vpop.f32.mrf.mxu0
    %414 = vmatprep.mubr.f32.mxu0 0.0
    %415 = vmatmul.mubr.f32.gmra.mxu0 %v295
    %v416 = vpop.f32.mrf.mxu0
    %v417 = vadd.f32 %v318, %v416
    %v418 = vpop.f32.mrf.mxu0
    %419 = vmatprep.mubr.f32.mxu0 0.0
    %420 = vmatmul.mubr.f32.gmra.mxu0 %v296
    %v421 = vpop.f32.mrf.mxu0
    %v422 = vadd.f32 %v318, %v421
    %v423 = vpop.f32.mrf.mxu0
    %424 = vdwg.mxu0
    %v425 = vadd.f32 %v387, %v397
    %v426 = vadd.f32 %v425, %v407
    %v427 = vadd.f32 %v426, %v417
    %v428 = vadd.f32 %v392, %v402
    %v429 = vadd.f32 %v428, %v412
    %v430 = vadd.f32 %v429, %v422
    %431 = vadd.xlane.f32.xlu0 %v427
    %v432 = vpop.xlane.xlu0 %431
    %433 = vadd.xlane.f32.xlu0 %v430
    %v434 = vpop.xlane.xlu0 %433
    %v435 = vmul.f32 %v387, %v387
    %v436 = vmul.f32 %v392, %v392
    %v437 = vmul.f32 %v397, %v397
    %v438 = vmul.f32 %v402, %v402
    %v439 = vmul.f32 %v407, %v407
    %v440 = vmul.f32 %v412, %v412
    %v441 = vmul.f32 %v417, %v417
    %v442 = vmul.f32 %v422, %v422
    %v443 = vadd.f32 %v435, %v437
    %v444 = vadd.f32 %v443, %v439
    %v445 = vadd.f32 %v444, %v441
    %v446 = vadd.f32 %v436, %v438
    %v447 = vadd.f32 %v446, %v440
    %v448 = vadd.f32 %v447, %v442
    %449 = vadd.xlane.f32.xlu0 %v445
    %v450 = vpop.xlane.xlu0 %449
    %451 = vadd.xlane.f32.xlu0 %v448
    %v452 = vpop.xlane.xlu0 %451
    %v453 = vmul.f32 %v432, 0.001953125
    %v454 = vmul.f32 %v434, 0.001953125
    %v455 = vmul.f32 %v450, 0.001953125
    %v456 = vmul.f32 %v452, 0.001953125
    %v457 = vmul.f32 %v453, %v453
    %v458 = vmul.f32 %v454, %v454
    %v459 = vsub.f32 %v455, %v457
    %v460 = vsub.f32 %v456, %v458
    %v461 = vmax.f32 %v459, 0.0
    %v462 = vmax.f32 %v460, 0.0
    %v463 = vadd.f32 %v461, 1e-05
    %v464 = vadd.f32 %v462, 1e-05
    %v465 = vrsqrt.pop %v463
    %v466 = vrsqrt.pop %v464
    %v467 = vmul.f32 %v465, %v65
    %v468 = vmul.f32 %v466, %v66
    %v469 = vmul.f32 %v453, %v467
    %v470 = vmul.f32 %v454, %v468
    %v471 = vsub.f32 %v67, %v469
    %v472 = vsub.f32 %v68, %v470
    %474 = vset.pattern.permute.xlu0 0
    %475 = vperm.xlu0 %474, %v467
    %v476 = vpop.permute.xlu0 %475
    %479 = vset.pattern.permute.xlu0 0
    %480 = vperm.xlu0 %479, %v468
    %v481 = vpop.permute.xlu0 %480
    %v483 = vmul.f32 %v387, %v476
    %v484 = vmul.f32 %v392, %v481
    %v485 = vmul.f32 %v397, %v476
    %v486 = vmul.f32 %v402, %v481
    %v487 = vmul.f32 %v407, %v476
    %v488 = vmul.f32 %v412, %v481
    %v489 = vmul.f32 %v417, %v476
    %v490 = vmul.f32 %v422, %v481
    %492 = vset.pattern.permute.xlu0 0
    %493 = vperm.xlu0 %492, %v471
    %v494 = vpop.permute.xlu0 %493
    %497 = vset.pattern.permute.xlu0 0
    %498 = vperm.xlu0 %497, %v472
    %v499 = vpop.permute.xlu0 %498
    %v501 = vadd.f32 %v483, %v494
    %v502 = vadd.f32 %v484, %v499
    %v503 = vadd.f32 %v485, %v494
    %v504 = vadd.f32 %v486, %v499
    %v505 = vadd.f32 %v487, %v494
    %v506 = vadd.f32 %v488, %v499
    %v507 = vadd.f32 %v489, %v494
    %v508 = vadd.f32 %v490, %v499
    %v509 = vmax.f32 %v501, 0.0
    %v510 = vmax.f32 %v502, 0.0
    %v511 = vmax.f32 %v503, 0.0
    %v512 = vmax.f32 %v504, 0.0
    %v513 = vmax.f32 %v505, 0.0
    %v514 = vmax.f32 %v506, 0.0
    %v515 = vmax.f32 %v507, 0.0
    %v516 = vmax.f32 %v508, 0.0
    %517 = vst [vmem:[#allocation7] sm:$0xff] %v509
    %518 = vst [vmem:[#allocation7 + $0x8] sm:$0xff] %v510
    %519 = vst [vmem:[#allocation7 + $0x10] sm:$0xff] %v511
    %520 = vst [vmem:[#allocation7 + $0x18] sm:$0xff] %v512
    %521 = vst [vmem:[#allocation7 + $0x20] sm:$0xff] %v513
    %522 = vst [vmem:[#allocation7 + $0x28] sm:$0xff] %v514
    %523 = vst [vmem:[#allocation7 + $0x30] sm:$0xff] %v515
    %524 = vst [vmem:[#allocation7 + $0x38] sm:$0xff] %v516
    // Predicated region
    $region46: #{tpu_custom_call.1} parent=1 // pred_check
      _
    $region47: #{tpu_custom_call.1} parent=1 // pred_check_branch
      %526 = sbr.rel (0) target = $region49
    $region48: #{tpu_custom_call.1} parent=1 // pred_region
      %s528 = ssub.s32 1024, 1024
      %529 = vsyncadd [#allocation4], %s528
      %s530 = sshll.u32 [#allocation7], 4
      %s531 = int_to_ptr.vmem [resolvable:$true] %s530
      %536 = dma.vmem_to_hbm [thread:$0]  %s531, 1024, %s9, [#allocation4], 128, 128, 8
    $region49: #{tpu_custom_call.1} parent=1 // pred_fallthru
      _
    // Predicated region
    $region50: #{tpu_custom_call.1} parent=1 // pred_check
      _
    $region51: #{tpu_custom_call.1} parent=1 // pred_check_branch
      %538 = sbr.rel (0) target = $region53
    $region52: #{tpu_custom_call.1} parent=1 // pred_region
      %539 = dma.done [#allocation4], 1024
    $region53: #{tpu_custom_call.1} parent=1 // pred_fallthru
      _
    %540 = vsyncpa [#allocation3], 1
    %541 = vsyncpa [#allocation6], 1
    %542 = vsyncpa [#allocation4], 1

</llo_original>
